<compile_context>
chip_gen: v5e
topology: v5e:2x2
jax: 0.10.0
libtpu: 0.0.40
codegen_flags: <defaults>
</compile_context>

<pallas_src>
import functools

import jax
import jax.numpy as jnp
from jax.experimental import pallas as pl
from jax.experimental.pallas import tpu as pltpu

HIDDEN1_UNITS = 300
HIDDEN2_UNITS = 600
LANE = 128


def _round_up(x, m):
    return ((x + m - 1) // m) * m


# --------------------------------------------------------------------------
# Kernel
# --------------------------------------------------------------------------
def critic_kernel(s_ref, a_ref,
                  w1_ref, b1_ref,
                  wh1_ref, wa_ref, bcat_ref,
                  wh3_ref, bh3_ref,
                  wv_ref, bv_ref,
                  out_ref):
    """One batch tile of the fused critic MLP. Weights are VMEM-resident
    (constant index_map); matmuls run in bf16 with f32 accumulation."""
    s = s_ref[...]                              # (TB, SP)  bf16
    a = a_ref[...]                              # (TB, AP)  bf16

    # A-projection first: independent of the first-layer matmul, so the MXU /
    # scheduler can overlap it with the S path.
    a_proj = jnp.dot(a, wa_ref[...], preferred_element_type=jnp.float32)   # (TB, H2P)

    # h = relu(S @ W1 + b1)
    h = jnp.dot(s, w1_ref[...], preferred_element_type=jnp.float32) + b1_ref[...]
    h = jnp.maximum(h, 0.0)

    # SA = h @ Wh1 + A @ Wa + (bh1 + ba)    (bias fusion done at pack time)
    sa = (jnp.dot(h.astype(jnp.bfloat16), wh1_ref[...],
                  preferred_element_type=jnp.float32)
          + a_proj + bcat_ref[...])

    # SA = relu(SA @ Wh3 + bh3)
    h3 = jnp.dot(sa.astype(jnp.bfloat16), wh3_ref[...],
                 preferred_element_type=jnp.float32) + bh3_ref[...]
    h3 = jnp.maximum(h3, 0.0)

    # out = SA @ Wv + bv   (lane-dense 128-wide output, sliced in wrapper)
    out_ref[...] = jnp.dot(h3.astype(jnp.bfloat16), wv_ref[...],
                           preferred_element_type=jnp.float32) + bv_ref[...]


# --------------------------------------------------------------------------
# Params
# --------------------------------------------------------------------------
def init_params(key, state_size, action_dim, dtype=jnp.float32):
    """PyTorch-style Linear init U(-1/sqrt(fan_in), 1/sqrt(fan_in)).
    Weights stored (in, out) (transposed vs torch's (out, in))."""
    def linear(k, fan_in, fan_out):
        kw, kb = jax.random.split(k)
        bound = 1.0 / (fan_in ** 0.5)
        w = jax.random.uniform(kw, (fan_in, fan_out), dtype, -bound, bound)
        b = jax.random.uniform(kb, (fan_out,), dtype, -bound, bound)
        return w, b

    k1, k2, k3, k4, k5 = jax.random.split(key, 5)
    w1, b1 = linear(k1, state_size, HIDDEN1_UNITS)        # self.w1
    wa, ba = linear(k2, action_dim, HIDDEN2_UNITS)        # self.a1
    wh1, bh1 = linear(k3, HIDDEN1_UNITS, HIDDEN2_UNITS)   # self.h1
    wh3, bh3 = linear(k4, HIDDEN2_UNITS, HIDDEN2_UNITS)   # self.h3
    wv, bv = linear(k5, HIDDEN2_UNITS, action_dim)        # self.V
    return dict(w1=w1, b1=b1, wa=wa, ba=ba, wh1=wh1, bh1=bh1,
                wh3=wh3, bh3=bh3, wv=wv, bv=bv)


def pack_params(raw, state_size, action_dim):
    """Zero-pad every dim to a multiple of 128 lanes, fuse bh1+ba, and cast
    weights to bf16 (biases stay f32 for the VPU adds)."""
    SP = _round_up(state_size, LANE)
    AP = _round_up(action_dim, LANE)
    H1P = _round_up(HIDDEN1_UNITS, LANE)      # 384
    H2P = _round_up(HIDDEN2_UNITS, LANE)      # 640
    OP = _round_up(action_dim, LANE)          # 128

    def pad_w(w, rows, cols):
        return jnp.pad(w, ((0, rows - w.shape[0]), (0, cols - w.shape[1])))

    def pad_b(b, cols):
        return jnp.pad(b, (0, cols - b.shape[0])).reshape(1, cols).astype(jnp.float32)

    w1 = pad_w(raw["w1"], SP, H1P).astype(jnp.bfloat16)
    b1 = pad_b(raw["b1"], H1P)

    wh1 = pad_w(raw["wh1"], H1P, H2P).astype(jnp.bfloat16)
    wa = pad_w(raw["wa"], AP, H2P).astype(jnp.bfloat16)
    bcat = pad_b(raw["bh1"] + raw["ba"], H2P)

    wh3 = pad_w(raw["wh3"], H2P, H2P).astype(jnp.bfloat16)
    bh3 = pad_b(raw["bh3"], H2P)

    wv = pad_w(raw["wv"], H2P, OP).astype(jnp.bfloat16)
    bv = pad_b(raw["bv"], OP)

    return (w1, b1, wh1, wa, bcat, wh3, bh3, wv, bv)


# --------------------------------------------------------------------------
# Wrapper
# --------------------------------------------------------------------------
@functools.partial(jax.jit, static_argnames=("action_dim",))
def critic_forward(S, A, packed, *, action_dim):
    # TODO(synk): for repeated tiny-batch RL inference, keep weights resident
    # across calls (cross-call prefetch / futures) instead of re-DMAing per call.
    w1, b1, wh1, wa, bcat, wh3, bh3, wv, bv = packed
    SP, H1P = w1.shape
    AP, H2P = wa.shape
    OP = wv.shape[1]

    B = S.shape[0]
    if B >= 256:
        tile_b = 256                      # full-height MXU tiles at large batch
    else:
        tile_b = max(8, _round_up(B, 8))  # tiny-batch latency regime
    Bp = _round_up(B, tile_b)

    Sp = jnp.pad(S, ((0, Bp - B), (0, SP - S.shape[1]))).astype(jnp.bfloat16)
    Ap = jnp.pad(A, ((0, Bp - B), (0, AP - A.shape[1]))).astype(jnp.bfloat16)

    def batch_spec(feat):
        return pl.BlockSpec((tile_b, feat), lambda i: (i, 0))

    def const_spec(shape):
        return pl.BlockSpec(shape, lambda i: (0, 0))   # VMEM-resident across grid

    out = pl.pallas_call(
        critic_kernel,
        out_shape=jax.ShapeDtypeStruct((Bp, OP), jnp.float32),
        grid=(Bp // tile_b,),
        in_specs=[
            batch_spec(SP),            # S tile
            batch_spec(AP),            # A tile
            const_spec((SP, H1P)),     # W1
            const_spec((1, H1P)),      # b1
            const_spec((H1P, H2P)),    # Wh1
            const_spec((AP, H2P)),     # Wa
            const_spec((1, H2P)),      # bcat = bh1 + ba
            const_spec((H2P, H2P)),    # Wh3
            const_spec((1, H2P)),      # bh3
            const_spec((H2P, OP)),     # Wv
            const_spec((1, OP)),       # bv
        ],
        out_specs=pl.BlockSpec((tile_b, OP), lambda i: (i, 0)),
        compiler_params=pltpu.CompilerParams(
            dimension_semantics=("parallel",),
            vmem_limit_bytes=32 << 20),
    )(Sp, Ap, w1, b1, wh1, wa, bcat, wh3, bh3, wv, bv)

    return out[:B, :action_dim]


# --------------------------------------------------------------------------
# References
# --------------------------------------------------------------------------
def critic_forward_ref_packed(S, A, packed, action_dim):
    """Plain-JAX replica of the kernel math (bf16 matmuls, f32 accum)."""
    w1, b1, wh1, wa, bcat, wh3, bh3, wv, bv = packed
    SP = w1.shape[0]
    AP = wa.shape[0]
    Sp = jnp.pad(S, ((0, 0), (0, SP - S.shape[1]))).astype(jnp.bfloat16)
    Ap = jnp.pad(A, ((0, 0), (0, AP - A.shape[1]))).astype(jnp.bfloat16)
    h = jnp.maximum(jnp.dot(Sp, w1, preferred_element_type=jnp.float32) + b1, 0.0)
    sa = (jnp.dot(h.astype(jnp.bfloat16), wh1, preferred_element_type=jnp.float32)
          + jnp.dot(Ap, wa, preferred_element_type=jnp.float32) + bcat)
    h3 = jnp.maximum(jnp.dot(sa.astype(jnp.bfloat16), wh3,
                             preferred_element_type=jnp.float32) + bh3, 0.0)
    out = jnp.dot(h3.astype(jnp.bfloat16), wv,
                  preferred_element_type=jnp.float32) + bv
    return out[:, :action_dim]


def critic_forward_ref_f32(S, A, raw):
    """Original (f32, unfused) module semantics."""
    s = jnp.maximum(S @ raw["w1"] + raw["b1"], 0.0)
    a = A @ raw["wa"] + raw["ba"]
    s = s @ raw["wh1"] + raw["bh1"]
    sa = s + a
    sa = jnp.maximum(sa @ raw["wh3"] + raw["bh3"], 0.0)
    return sa @ raw["wv"] + raw["bv"]


# --------------------------------------------------------------------------
if __name__ == "__main__":
    batch = 2
    state_size = 32
    action_dim = 4

    key = jax.random.PRNGKey(0)
    k_s, k_a, k_p = jax.random.split(key, 3)

    S = jax.random.normal(k_s, (batch, state_size), jnp.float32)
    A = jax.random.normal(k_a, (batch, action_dim), jnp.float32)

    raw = init_params(k_p, state_size, action_dim)
    packed = pack_params(raw, state_size, action_dim)

    out = critic_forward(S, A, packed, action_dim=action_dim)
    out = jax.block_until_ready(out)
    assert out.shape == (batch, action_dim), out.shape

    ref_packed = critic_forward_ref_packed(S, A, packed, action_dim)
    ref_f32 = critic_forward_ref_f32(S, A, raw)

    err_packed = float(jnp.max(jnp.abs(out - ref_packed)))
    err_f32 = float(jnp.max(jnp.abs(out - ref_f32)))
    assert err_packed < 1e-2, f"kernel vs bf16 reference mismatch: {err_packed}"
    assert err_f32 < 5e-2, f"kernel vs f32 reference mismatch: {err_f32}"

    print("KERNEL_OK")
</pallas_src>

<mosaic_0001>
module attributes {stable_mosaic.version = 11 : i64} {
  func.func @critic_kernel(%arg0: i32, %arg1: memref<8x128xbf16, #tpu.memory_space<vmem>>, %arg2: memref<8x128xbf16, #tpu.memory_space<vmem>>, %arg3: memref<128x384xbf16, #tpu.memory_space<vmem>>, %arg4: memref<1x384xf32, #tpu.memory_space<vmem>>, %arg5: memref<384x640xbf16, #tpu.memory_space<vmem>>, %arg6: memref<128x640xbf16, #tpu.memory_space<vmem>>, %arg7: memref<1x640xf32, #tpu.memory_space<vmem>>, %arg8: memref<640x640xbf16, #tpu.memory_space<vmem>>, %arg9: memref<1x640xf32, #tpu.memory_space<vmem>>, %arg10: memref<640x128xbf16, #tpu.memory_space<vmem>>, %arg11: memref<1x128xf32, #tpu.memory_space<vmem>>, %arg12: memref<8x128xf32, #tpu.memory_space<vmem>>) attributes {dimension_semantics = [#tpu.dimension_semantics<parallel>], iteration_bounds = array<i64: 1>, scalar_prefetch = 0 : i64, scratch_operands = 0 : i64, tpu.core_type = #tpu.core_type<tc>, window_params = [{transform_indices = @transform_0, window_bounds = array<i64: 8, 128>}, {transform_indices = @transform_1, window_bounds = array<i64: 8, 128>}, {pipeline_mode = #tpu.pipeline_mode<synchronous>, transform_indices = @transform_2, window_bounds = array<i64: 128, 384>}, {pipeline_mode = #tpu.pipeline_mode<synchronous>, transform_indices = @transform_3, window_bounds = array<i64: 1, 384>}, {pipeline_mode = #tpu.pipeline_mode<synchronous>, transform_indices = @transform_4, window_bounds = array<i64: 384, 640>}, {pipeline_mode = #tpu.pipeline_mode<synchronous>, transform_indices = @transform_5, window_bounds = array<i64: 128, 640>}, {pipeline_mode = #tpu.pipeline_mode<synchronous>, transform_indices = @transform_6, window_bounds = array<i64: 1, 640>}, {pipeline_mode = #tpu.pipeline_mode<synchronous>, transform_indices = @transform_7, window_bounds = array<i64: 640, 640>}, {pipeline_mode = #tpu.pipeline_mode<synchronous>, transform_indices = @transform_8, window_bounds = array<i64: 1, 640>}, {pipeline_mode = #tpu.pipeline_mode<synchronous>, transform_indices = @transform_9, window_bounds = array<i64: 640, 128>}, {pipeline_mode = #tpu.pipeline_mode<synchronous>, transform_indices = @transform_10, window_bounds = array<i64: 1, 128>}, {transform_indices = @transform_11, window_bounds = array<i64: 8, 128>}]} {
    %c0 = arith.constant 0 : index
    %c0_0 = arith.constant 0 : index
    %0 = vector.load %arg1[%c0, %c0_0] : memref<8x128xbf16, #tpu.memory_space<vmem>>, vector<8x128xbf16>
    %c0_1 = arith.constant 0 : index
    %c0_2 = arith.constant 0 : index
    %1 = vector.load %arg2[%c0_1, %c0_2] : memref<8x128xbf16, #tpu.memory_space<vmem>>, vector<8x128xbf16>
    %c0_3 = arith.constant 0 : index
    %c0_4 = arith.constant 0 : index
    %2 = vector.load %arg6[%c0_3, %c0_4] : memref<128x640xbf16, #tpu.memory_space<vmem>>, vector<128x640xbf16>
    %cst = arith.constant dense<0.000000e+00> : vector<8x640xf32>
    %3 = tpu.matmul %1, %2, %cst {dimension_numbers = #tpu.dot_dimension_numbers<[1], [0], [0], [1], [0, 0, 1, 1], [], []>} : vector<8x128xbf16>, vector<128x640xbf16>, vector<8x640xf32> -> vector<8x640xf32>
    %c0_5 = arith.constant 0 : index
    %c0_6 = arith.constant 0 : index
    %4 = vector.load %arg3[%c0_5, %c0_6] : memref<128x384xbf16, #tpu.memory_space<vmem>>, vector<128x384xbf16>
    %cst_7 = arith.constant dense<0.000000e+00> : vector<8x384xf32>
    %5 = tpu.matmul %0, %4, %cst_7 {dimension_numbers = #tpu.dot_dimension_numbers<[1], [0], [0], [1], [0, 0, 1, 1], [], []>} : vector<8x128xbf16>, vector<128x384xbf16>, vector<8x384xf32> -> vector<8x384xf32>
    %c0_8 = arith.constant 0 : index
    %c0_9 = arith.constant 0 : index
    %6 = vector.load %arg4[%c0_8, %c0_9] : memref<1x384xf32, #tpu.memory_space<vmem>>, vector<1x384xf32>
    %7 = vector.broadcast %6 : vector<1x384xf32> to vector<8x384xf32>
    %8 = arith.addf %5, %7 : vector<8x384xf32>
    %cst_10 = arith.constant 0.000000e+00 : f32
    %9 = vector.broadcast %cst_10 : f32 to vector<8x384xf32>
    %10 = arith.maximumf %8, %9 : vector<8x384xf32>
    %11 = arith.truncf %10 : vector<8x384xf32> to vector<8x384xbf16>
    %c0_11 = arith.constant 0 : index
    %c0_12 = arith.constant 0 : index
    %12 = vector.load %arg5[%c0_11, %c0_12] : memref<384x640xbf16, #tpu.memory_space<vmem>>, vector<384x640xbf16>
    %cst_13 = arith.constant dense<0.000000e+00> : vector<8x640xf32>
    %13 = tpu.matmul %11, %12, %cst_13 {dimension_numbers = #tpu.dot_dimension_numbers<[1], [0], [0], [1], [0, 0, 1, 1], [], []>} : vector<8x384xbf16>, vector<384x640xbf16>, vector<8x640xf32> -> vector<8x640xf32>
    %14 = arith.addf %13, %3 : vector<8x640xf32>
    %c0_14 = arith.constant 0 : index
    %c0_15 = arith.constant 0 : index
    %15 = vector.load %arg7[%c0_14, %c0_15] : memref<1x640xf32, #tpu.memory_space<vmem>>, vector<1x640xf32>
    %16 = vector.broadcast %15 : vector<1x640xf32> to vector<8x640xf32>
    %17 = arith.addf %14, %16 : vector<8x640xf32>
    %18 = arith.truncf %17 : vector<8x640xf32> to vector<8x640xbf16>
    %c0_16 = arith.constant 0 : index
    %c0_17 = arith.constant 0 : index
    %19 = vector.load %arg8[%c0_16, %c0_17] : memref<640x640xbf16, #tpu.memory_space<vmem>>, vector<640x640xbf16>
    %cst_18 = arith.constant dense<0.000000e+00> : vector<8x640xf32>
    %20 = tpu.matmul %18, %19, %cst_18 {dimension_numbers = #tpu.dot_dimension_numbers<[1], [0], [0], [1], [0, 0, 1, 1], [], []>} : vector<8x640xbf16>, vector<640x640xbf16>, vector<8x640xf32> -> vector<8x640xf32>
    %c0_19 = arith.constant 0 : index
    %c0_20 = arith.constant 0 : index
    %21 = vector.load %arg9[%c0_19, %c0_20] : memref<1x640xf32, #tpu.memory_space<vmem>>, vector<1x640xf32>
    %22 = vector.broadcast %21 : vector<1x640xf32> to vector<8x640xf32>
    %23 = arith.addf %20, %22 : vector<8x640xf32>
    %cst_21 = arith.constant 0.000000e+00 : f32
    %24 = vector.broadcast %cst_21 : f32 to vector<8x640xf32>
    %25 = arith.maximumf %23, %24 : vector<8x640xf32>
    %26 = arith.truncf %25 : vector<8x640xf32> to vector<8x640xbf16>
    %c0_22 = arith.constant 0 : index
    %c0_23 = arith.constant 0 : index
    %27 = vector.load %arg10[%c0_22, %c0_23] : memref<640x128xbf16, #tpu.memory_space<vmem>>, vector<640x128xbf16>
    %cst_24 = arith.constant dense<0.000000e+00> : vector<8x128xf32>
    %28 = tpu.matmul %26, %27, %cst_24 {dimension_numbers = #tpu.dot_dimension_numbers<[1], [0], [0], [1], [0, 0, 1, 1], [], []>} : vector<8x640xbf16>, vector<640x128xbf16>, vector<8x128xf32> -> vector<8x128xf32>
    %c0_25 = arith.constant 0 : index
    %c0_26 = arith.constant 0 : index
    %29 = vector.load %arg11[%c0_25, %c0_26] : memref<1x128xf32, #tpu.memory_space<vmem>>, vector<1x128xf32>
    %30 = vector.broadcast %29 : vector<1x128xf32> to vector<8x128xf32>
    %31 = arith.addf %28, %30 : vector<8x128xf32>
    %c0_27 = arith.constant 0 : index
    %c0_28 = arith.constant 0 : index
    %32 = vector.load %arg12[%c0_27, %c0_28] : memref<8x128xf32, #tpu.memory_space<vmem>>, vector<8x128xf32>
    tpu.vector_store %arg12[%c0_27, %c0_28], %31 {strides = array<i32>} : memref<8x128xf32, #tpu.memory_space<vmem>>, vector<8x128xf32>,
    return
  }
  func.func @transform_0(%arg0: i32) -> (i32, i32) {
    %c0_i32 = arith.constant 0 : i32
    %c0_i32_0 = arith.constant 0 : i32
    return %arg0, %c0_i32 : i32, i32
  }
  func.func @transform_1(%arg0: i32) -> (i32, i32) {
    %c0_i32 = arith.constant 0 : i32
    %c0_i32_0 = arith.constant 0 : i32
    return %arg0, %c0_i32 : i32, i32
  }
  func.func @transform_2(%arg0: i32) -> (i32, i32) {
    %c0_i32 = arith.constant 0 : i32
    %c0_i32_0 = arith.constant 0 : i32
    %c0_i32_1 = arith.constant 0 : i32
    return %c0_i32, %c0_i32_0 : i32, i32
  }
  func.func @transform_3(%arg0: i32) -> (i32, i32) {
    %c0_i32 = arith.constant 0 : i32
    %c0_i32_0 = arith.constant 0 : i32
    %c0_i32_1 = arith.constant 0 : i32
    return %c0_i32, %c0_i32_0 : i32, i32
  }
  func.func @transform_4(%arg0: i32) -> (i32, i32) {
    %c0_i32 = arith.constant 0 : i32
    %c0_i32_0 = arith.constant 0 : i32
    %c0_i32_1 = arith.constant 0 : i32
    return %c0_i32, %c0_i32_0 : i32, i32
  }
  func.func @transform_5(%arg0: i32) -> (i32, i32) {
    %c0_i32 = arith.constant 0 : i32
    %c0_i32_0 = arith.constant 0 : i32
    %c0_i32_1 = arith.constant 0 : i32
    return %c0_i32, %c0_i32_0 : i32, i32
  }
  func.func @transform_6(%arg0: i32) -> (i32, i32) {
    %c0_i32 = arith.constant 0 : i32
    %c0_i32_0 = arith.constant 0 : i32
    %c0_i32_1 = arith.constant 0 : i32
    return %c0_i32, %c0_i32_0 : i32, i32
  }
  func.func @transform_7(%arg0: i32) -> (i32, i32) {
    %c0_i32 = arith.constant 0 : i32
    %c0_i32_0 = arith.constant 0 : i32
    %c0_i32_1 = arith.constant 0 : i32
    return %c0_i32, %c0_i32_0 : i32, i32
  }
  func.func @transform_8(%arg0: i32) -> (i32, i32) {
    %c0_i32 = arith.constant 0 : i32
    %c0_i32_0 = arith.constant 0 : i32
    %c0_i32_1 = arith.constant 0 : i32
    return %c0_i32, %c0_i32_0 : i32, i32
  }
  func.func @transform_9(%arg0: i32) -> (i32, i32) {
    %c0_i32 = arith.constant 0 : i32
    %c0_i32_0 = arith.constant 0 : i32
    %c0_i32_1 = arith.constant 0 : i32
    return %c0_i32, %c0_i32_0 : i32, i32
  }
  func.func @transform_10(%arg0: i32) -> (i32, i32) {
    %c0_i32 = arith.constant 0 : i32
    %c0_i32_0 = arith.constant 0 : i32
    %c0_i32_1 = arith.constant 0 : i32
    return %c0_i32, %c0_i32_0 : i32, i32
  }
  func.func @transform_11(%arg0: i32) -> (i32, i32) {
    %c0_i32 = arith.constant 0 : i32
    %c0_i32_0 = arith.constant 0 : i32
    return %arg0, %c0_i32 : i32, i32
  }
}

</mosaic_0001>

<llo_original>
// kernel: critic_forward.1
$region0: #{critic_forward.1}
  #allocation0 [shape = 'u32[]', space=smem, size = 0x4, offset = 0x4, fixed_abs, tag = 'smem constant byte address 0x4 - core index']
  #allocation1 [shape = 'u32[72,128]{1,0:T(1,128)}', space=vmem, size = 0x9000, scoped, tag = 'internal scratch']
  %s0 = inlined_call_operand.vmem [shape: bf16[8,128], index: 0, kind: input, shape index: {}]
  %s1 = inlined_call_operand.vmem [shape: bf16[8,128], index: 1, kind: input, shape index: {}]
  %s2 = inlined_call_operand.hbm [shape: bf16[128,384], index: 2, kind: input, shape index: {}]
  %s3 = inlined_call_operand.vmem [shape: f32[1,384], index: 3, kind: input, shape index: {}]
  %s4 = inlined_call_operand.hbm [shape: bf16[384,640], index: 4, kind: input, shape index: {}]
  %s5 = inlined_call_operand.hbm [shape: bf16[128,640], index: 5, kind: input, shape index: {}]
  %s6 = inlined_call_operand.vmem [shape: f32[1,640], index: 6, kind: input, shape index: {}]
  %s7 = inlined_call_operand.hbm [shape: bf16[640,640], index: 7, kind: input, shape index: {}]
  %s8 = inlined_call_operand.vmem [shape: f32[1,640], index: 8, kind: input, shape index: {}]
  %s9 = inlined_call_operand.hbm [shape: bf16[640,128], index: 9, kind: input, shape index: {}]
  %s10 = inlined_call_operand.vmem [shape: f32[1,128], index: 10, kind: input, shape index: {}]
  %s11 = inlined_call_operand.vmem [shape: f32[8,128], index: 11, kind: output, shape index: {}]
  %s12 = sld [smem:[#allocation0]]
  $region74: #{critic_forward.1} parent=0
    _
  %s14 = ssub.s32 1, %s12
  %s15 = scalar_select 0, %s14, %s12
  $region1: #{critic_forward.1} parent=0
    #allocation2 [shape = 'u8[98304]{0}', space=vmem, size = 0x18000, scoped, tag = 'input window, operand 2, single buffered']
    #allocation3 [shape = 's32[1]{0}', space=sflag, size = 0x4, scoped, tag = 'scoped memory for critic_forward.1']
    #allocation4 [shape = 'u8[491520]{0}', space=vmem, size = 0x78000, scoped, tag = 'input window, operand 4, single buffered']
    #allocation5 [shape = 's32[1]{0}', space=sflag, size = 0x4, scoped, tag = 'scoped memory for critic_forward.1']
    #allocation6 [shape = 'u8[163840]{0}', space=vmem, size = 0x28000, scoped, tag = 'input window, operand 5, single buffered']
    #allocation7 [shape = 'u8[819200]{0}', space=vmem, size = 0xc8000, scoped, tag = 'input window, operand 7, single buffered']
    #allocation8 [shape = 's32[1]{0}', space=sflag, size = 0x4, scoped, tag = 'scoped memory for critic_forward.1']
    #allocation9 [shape = 'u8[163840]{0}', space=vmem, size = 0x28000, scoped, tag = 'input window, operand 9, single buffered']
    %16 = vsyncpa [#allocation3], 0
    %17 = vsyncpa [#allocation5], 0
    %18 = vsyncpa [#allocation8], 0
    // Predicated region
    $region2: #{critic_forward.1} parent=1 // pred_check
      _
    $region3: #{critic_forward.1} parent=1 // pred_check_branch
      %20 = sbr.rel (0) target = $region5
    $region4: #{critic_forward.1} parent=1 // pred_region
      _
    $region5: #{critic_forward.1} parent=1 // pred_fallthru
      _
    // Predicated region
    $region6: #{critic_forward.1} parent=1 // pred_check
      _
    $region7: #{critic_forward.1} parent=1 // pred_check_branch
      %22 = sbr.rel (0) target = $region9
    $region8: #{critic_forward.1} parent=1 // pred_region
      _
    $region9: #{critic_forward.1} parent=1 // pred_fallthru
      _
    // Predicated region
    $region10: #{critic_forward.1} parent=1 // pred_check
      _
    $region11: #{critic_forward.1} parent=1 // pred_check_branch
      %24 = sbr.rel (0) target = $region13
    $region12: #{critic_forward.1} parent=1 // pred_region
      %26 = vsyncadd [#allocation3], 0
      %s27 = sshll.u32 %s2, 4
      %s28 = int_to_ptr.hbm [resolvable:$true] %s27
      %s29 = sshll.u32 [#allocation2], 4
      %s30 = int_to_ptr.vmem [resolvable:$true] %s29
      %35 = dma.hbm_to_vmem [thread:$0]  %s28, 3072, %s30, [#allocation3], 192, 192, 12
    $region13: #{critic_forward.1} parent=1 // pred_fallthru
      _
    // Predicated region
    $region14: #{critic_forward.1} parent=1 // pred_check
      _
    $region15: #{critic_forward.1} parent=1 // pred_check_branch
      %37 = sbr.rel (0) target = $region17
    $region16: #{critic_forward.1} parent=1 // pred_region
      _
    $region17: #{critic_forward.1} parent=1 // pred_fallthru
      _
    // Predicated region
    $region18: #{critic_forward.1} parent=1 // pred_check
      _
    $region19: #{critic_forward.1} parent=1 // pred_check_branch
      %39 = sbr.rel (0) target = $region21
    $region20: #{critic_forward.1} parent=1 // pred_region
      %41 = vsyncadd [#allocation5], 0
      %s42 = sshll.u32 %s4, 4
      %s43 = int_to_ptr.hbm [resolvable:$true] %s42
      %s44 = sshll.u32 [#allocation4], 4
      %s45 = int_to_ptr.vmem [resolvable:$true] %s44
      %50 = dma.hbm_to_vmem [thread:$0]  %s43, 15360, %s45, [#allocation5], 320, 320, 20
    $region21: #{critic_forward.1} parent=1 // pred_fallthru
      _
    // Predicated region
    $region22: #{critic_forward.1} parent=1 // pred_check
      _
    $region23: #{critic_forward.1} parent=1 // pred_check_branch
      %52 = sbr.rel (0) target = $region25
    $region24: #{critic_forward.1} parent=1 // pred_region
      %54 = vsyncadd [#allocation5], 0
      %s55 = sshll.u32 %s5, 4
      %s56 = int_to_ptr.hbm [resolvable:$true] %s55
      %s57 = sshll.u32 [#allocation6], 4
      %s58 = int_to_ptr.vmem [resolvable:$true] %s57
      %63 = dma.hbm_to_vmem [thread:$0]  %s56, 5120, %s58, [#allocation5], 320, 320, 20
    $region25: #{critic_forward.1} parent=1 // pred_fallthru
      _
    // Predicated region
    $region26: #{critic_forward.1} parent=1 // pred_check
      _
    $region27: #{critic_forward.1} parent=1 // pred_check_branch
      %65 = sbr.rel (0) target = $region29
    $region28: #{critic_forward.1} parent=1 // pred_region
      _
    $region29: #{critic_forward.1} parent=1 // pred_fallthru
      _
    // Predicated region
    $region30: #{critic_forward.1} parent=1 // pred_check
      _
    $region31: #{critic_forward.1} parent=1 // pred_check_branch
      %67 = sbr.rel (0) target = $region33
    $region32: #{critic_forward.1} parent=1 // pred_region
      %69 = vsyncadd [#allocation8], 0
      %s70 = sshll.u32 %s7, 4
      %s71 = int_to_ptr.hbm [resolvable:$true] %s70
      %s72 = sshll.u32 [#allocation7], 4
      %s73 = int_to_ptr.vmem [resolvable:$true] %s72
      %78 = dma.hbm_to_vmem [thread:$0]  %s71, 25600, %s73, [#allocation8], 320, 320, 20
    $region33: #{critic_forward.1} parent=1 // pred_fallthru
      _
    // Predicated region
    $region34: #{critic_forward.1} parent=1 // pred_check
      _
    $region35: #{critic_forward.1} parent=1 // pred_check_branch
      %80 = sbr.rel (0) target = $region37
    $region36: #{critic_forward.1} parent=1 // pred_region
      _
    $region37: #{critic_forward.1} parent=1 // pred_fallthru
      _
    // Predicated region
    $region38: #{critic_forward.1} parent=1 // pred_check
      _
    $region39: #{critic_forward.1} parent=1 // pred_check_branch
      %82 = sbr.rel (0) target = $region41
    $region40: #{critic_forward.1} parent=1 // pred_region
      %84 = vsyncadd [#allocation8], 0
      %s85 = sshll.u32 %s9, 4
      %s86 = int_to_ptr.hbm [resolvable:$true] %s85
      %s87 = sshll.u32 [#allocation9], 4
      %s88 = int_to_ptr.vmem [resolvable:$true] %s87
      %93 = dma.hbm_to_vmem [thread:$0]  %s86, 5120, %s88, [#allocation8], 64, 64, 4
    $region41: #{critic_forward.1} parent=1 // pred_fallthru
      _
    // Predicated region
    $region42: #{critic_forward.1} parent=1 // pred_check
      _
    $region43: #{critic_forward.1} parent=1 // pred_check_branch
      %95 = sbr.rel (0) target = $region45
    $region44: #{critic_forward.1} parent=1 // pred_region
      _
    $region45: #{critic_forward.1} parent=1 // pred_fallthru
      _
    // Predicated region
    $region46: #{critic_forward.1} parent=1 // pred_check
      _
    $region47: #{critic_forward.1} parent=1 // pred_check_branch
      %97 = sbr.rel (0) target = $region49
    $region48: #{critic_forward.1} parent=1 // pred_region
      %99 = dma.done [#allocation3], 3072
    $region49: #{critic_forward.1} parent=1 // pred_fallthru
      _
    // Predicated region
    $region50: #{critic_forward.1} parent=1 // pred_check
      _
    $region51: #{critic_forward.1} parent=1 // pred_check_branch
      %101 = sbr.rel (0) target = $region53
    $region52: #{critic_forward.1} parent=1 // pred_region
      %103 = dma.done [#allocation5], 15360
    $region53: #{critic_forward.1} parent=1 // pred_fallthru
      _
    // Predicated region
    $region54: #{critic_forward.1} parent=1 // pred_check
      _
    $region55: #{critic_forward.1} parent=1 // pred_check_branch
      %105 = sbr.rel (0) target = $region57
    $region56: #{critic_forward.1} parent=1 // pred_region
      %107 = dma.done [#allocation5], 5120
    $region57: #{critic_forward.1} parent=1 // pred_fallthru
      _
    // Predicated region
    $region58: #{critic_forward.1} parent=1 // pred_check
      _
    $region59: #{critic_forward.1} parent=1 // pred_check_branch
      %109 = sbr.rel (0) target = $region61
    $region60: #{critic_forward.1} parent=1 // pred_region
      %111 = dma.done [#allocation8], 25600
    $region61: #{critic_forward.1} parent=1 // pred_fallthru
      _
    // Predicated region
    $region62: #{critic_forward.1} parent=1 // pred_check
      _
    $region63: #{critic_forward.1} parent=1 // pred_check_branch
      %113 = sbr.rel (0) target = $region65
    $region64: #{critic_forward.1} parent=1 // pred_region
      %115 = dma.done [#allocation8], 5120
    $region65: #{critic_forward.1} parent=1 // pred_fallthru
      _
    %v116 = vld [vmem:[%s0] sm:$0xf]
    %v117 = vld [vmem:[%s1] sm:$0xf]
    %v118 = vld [vmem:[#allocation6] sm:$0xff]
    %v119 = vld [vmem:[#allocation6 + $0x8] sm:$0xff]
    %v120 = vld [vmem:[#allocation6 + $0x10] sm:$0xf]
    %v121 = vld [vmem:[#allocation6 + $0x14] sm:$0xff]
    %v122 = vld [vmem:[#allocation6 + $0x1c] sm:$0xff]
    %v123 = vld [vmem:[#allocation6 + $0x24] sm:$0xf]
    %v124 = vld [vmem:[#allocation6 + $0x28] sm:$0xff]
    %v125 = vld [vmem:[#allocation6 + $0x30] sm:$0xff]
    %v126 = vld [vmem:[#allocation6 + $0x38] sm:$0xf]
    %v127 = vld [vmem:[#allocation6 + $0x3c] sm:$0xff]
    %v128 = vld [vmem:[#allocation6 + $0x44] sm:$0xff]
    %v129 = vld [vmem:[#allocation6 + $0x4c] sm:$0xf]
    %v130 = vld [vmem:[#allocation6 + $0x50] sm:$0xff]
    %v131 = vld [vmem:[#allocation6 + $0x58] sm:$0xff]
    %v132 = vld [vmem:[#allocation6 + $0x60] sm:$0xf]
    %v133 = vld [vmem:[#allocation6 + $0x64] sm:$0xff]
    %v134 = vld [vmem:[#allocation6 + $0x6c] sm:$0xff]
    %v135 = vld [vmem:[#allocation6 + $0x74] sm:$0xf]
    %v136 = vld [vmem:[#allocation6 + $0x78] sm:$0xff]
    %v137 = vld [vmem:[#allocation6 + $0x80] sm:$0xff]
    %v138 = vld [vmem:[#allocation6 + $0x88] sm:$0xf]
    %v139 = vld [vmem:[#allocation6 + $0x8c] sm:$0xff]
    %v140 = vld [vmem:[#allocation6 + $0x94] sm:$0xff]
    %v141 = vld [vmem:[#allocation6 + $0x9c] sm:$0xf]
    %v142 = vld [vmem:[#allocation6 + $0xa0] sm:$0xff]
    %v143 = vld [vmem:[#allocation6 + $0xa8] sm:$0xff]
    %v144 = vld [vmem:[#allocation6 + $0xb0] sm:$0xf]
    %v145 = vld [vmem:[#allocation6 + $0xb4] sm:$0xff]
    %v146 = vld [vmem:[#allocation6 + $0xbc] sm:$0xff]
    %v147 = vld [vmem:[#allocation6 + $0xc4] sm:$0xf]
    %v148 = vld [vmem:[#allocation6 + $0xc8] sm:$0xff]
    %v149 = vld [vmem:[#allocation6 + $0xd0] sm:$0xff]
    %v150 = vld [vmem:[#allocation6 + $0xd8] sm:$0xf]
    %v151 = vld [vmem:[#allocation6 + $0xdc] sm:$0xff]
    %v152 = vld [vmem:[#allocation6 + $0xe4] sm:$0xff]
    %v153 = vld [vmem:[#allocation6 + $0xec] sm:$0xf]
    %v154 = vld [vmem:[#allocation6 + $0xf0] sm:$0xff]
    %v155 = vld [vmem:[#allocation6 + $0xf8] sm:$0xff]
    %v156 = vld [vmem:[#allocation6 + $0x100] sm:$0xf]
    %v157 = vld [vmem:[#allocation6 + $0x104] sm:$0xff]
    %v158 = vld [vmem:[#allocation6 + $0x10c] sm:$0xff]
    %v159 = vld [vmem:[#allocation6 + $0x114] sm:$0xf]
    %v160 = vld [vmem:[#allocation6 + $0x118] sm:$0xff]
    %v161 = vld [vmem:[#allocation6 + $0x120] sm:$0xff]
    %v162 = vld [vmem:[#allocation6 + $0x128] sm:$0xf]
    %v163 = vld [vmem:[#allocation6 + $0x12c] sm:$0xff]
    %v164 = vld [vmem:[#allocation6 + $0x134] sm:$0xff]
    %v165 = vld [vmem:[#allocation6 + $0x13c] sm:$0xf]
    %v214 = vunpack.c.l.b16 %v118
    %v215 = vunpack.c.h.b16 %v118
    %v216 = vunpack.c.l.b16 %v119
    %v217 = vunpack.c.h.b16 %v119
    %v218 = vunpack.c.l.b16 %v120
    %v219 = vunpack.c.l.b16 %v121
    %v220 = vunpack.c.h.b16 %v121
    %v221 = vunpack.c.l.b16 %v122
    %v222 = vunpack.c.h.b16 %v122
    %v223 = vunpack.c.l.b16 %v123
    %v224 = vunpack.c.l.b16 %v124
    %v225 = vunpack.c.h.b16 %v124
    %v226 = vunpack.c.l.b16 %v125
    %v227 = vunpack.c.h.b16 %v125
    %v228 = vunpack.c.l.b16 %v126
    %v229 = vunpack.c.l.b16 %v127
    %v230 = vunpack.c.h.b16 %v127
    %v231 = vunpack.c.l.b16 %v128
    %v232 = vunpack.c.h.b16 %v128
    %v233 = vunpack.c.l.b16 %v129
    %v234 = vunpack.c.l.b16 %v130
    %v235 = vunpack.c.h.b16 %v130
    %v236 = vunpack.c.l.b16 %v131
    %v237 = vunpack.c.h.b16 %v131
    %v238 = vunpack.c.l.b16 %v132
    %v239 = vunpack.c.l.b16 %v133
    %v240 = vunpack.c.h.b16 %v133
    %v241 = vunpack.c.l.b16 %v134
    %v242 = vunpack.c.h.b16 %v134
    %v243 = vunpack.c.l.b16 %v135
    %v244 = vunpack.c.l.b16 %v136
    %v245 = vunpack.c.h.b16 %v136
    %v246 = vunpack.c.l.b16 %v137
    %v247 = vunpack.c.h.b16 %v137
    %v248 = vunpack.c.l.b16 %v138
    %v249 = vunpack.c.l.b16 %v139
    %v250 = vunpack.c.h.b16 %v139
    %v251 = vunpack.c.l.b16 %v140
    %v252 = vunpack.c.h.b16 %v140
    %v253 = vunpack.c.l.b16 %v141
    %v254 = vunpack.c.l.b16 %v142
    %v255 = vunpack.c.h.b16 %v142
    %v256 = vunpack.c.l.b16 %v143
    %v257 = vunpack.c.h.b16 %v143
    %v258 = vunpack.c.l.b16 %v144
    %v259 = vunpack.c.l.b16 %v145
    %v260 = vunpack.c.h.b16 %v145
    %v261 = vunpack.c.l.b16 %v146
    %v262 = vunpack.c.h.b16 %v146
    %v263 = vunpack.c.l.b16 %v147
    %v264 = vunpack.c.l.b16 %v148
    %v265 = vunpack.c.h.b16 %v148
    %v266 = vunpack.c.l.b16 %v149
    %v267 = vunpack.c.h.b16 %v149
    %v268 = vunpack.c.l.b16 %v150
    %v269 = vunpack.c.l.b16 %v151
    %v270 = vunpack.c.h.b16 %v151
    %v271 = vunpack.c.l.b16 %v152
    %v272 = vunpack.c.h.b16 %v152
    %v273 = vunpack.c.l.b16 %v153
    %v274 = vunpack.c.l.b16 %v154
    %v275 = vunpack.c.h.b16 %v154
    %v276 = vunpack.c.l.b16 %v155
    %v277 = vunpack.c.h.b16 %v155
    %v278 = vunpack.c.l.b16 %v156
    %v279 = vunpack.c.l.b16 %v157
    %v280 = vunpack.c.h.b16 %v157
    %v281 = vunpack.c.l.b16 %v158
    %v282 = vunpack.c.h.b16 %v158
    %v283 = vunpack.c.l.b16 %v159
    %v284 = vunpack.c.l.b16 %v160
    %v285 = vunpack.c.h.b16 %v160
    %v286 = vunpack.c.l.b16 %v161
    %v287 = vunpack.c.h.b16 %v161
    %v288 = vunpack.c.l.b16 %v162
    %v289 = vunpack.c.l.b16 %v163
    %v290 = vunpack.c.h.b16 %v163
    %v291 = vunpack.c.l.b16 %v164
    %v292 = vunpack.c.h.b16 %v164
    %v293 = vunpack.c.l.b16 %v165
    %v294 = vpack.c.b16 %v219, %v214
    %v295 = vpack.c.b16 %v220, %v215
    %v296 = vpack.c.b16 %v221, %v216
    %v297 = vpack.c.b16 %v222, %v217
    %v298 = vpack.c.b16 %v223, %v218
    %v299 = vpack.c.b16 %v229, %v224
    %v300 = vpack.c.b16 %v230, %v225
    %v301 = vpack.c.b16 %v231, %v226
    %v302 = vpack.c.b16 %v232, %v227
    %v303 = vpack.c.b16 %v233, %v228
    %v304 = vpack.c.b16 %v239, %v234
    %v305 = vpack.c.b16 %v240, %v235
    %v306 = vpack.c.b16 %v241, %v236
    %v307 = vpack.c.b16 %v242, %v237
    %v308 = vpack.c.b16 %v243, %v238
    %v309 = vpack.c.b16 %v249, %v244
    %v310 = vpack.c.b16 %v250, %v245
    %v311 = vpack.c.b16 %v251, %v246
    %v312 = vpack.c.b16 %v252, %v247
    %v313 = vpack.c.b16 %v253, %v248
    %v314 = vpack.c.b16 %v259, %v254
    %v315 = vpack.c.b16 %v260, %v255
    %v316 = vpack.c.b16 %v261, %v256
    %v317 = vpack.c.b16 %v262, %v257
    %v318 = vpack.c.b16 %v263, %v258
    %v319 = vpack.c.b16 %v269, %v264
    %v320 = vpack.c.b16 %v270, %v265
    %v321 = vpack.c.b16 %v271, %v266
    %v322 = vpack.c.b16 %v272, %v267
    %v323 = vpack.c.b16 %v273, %v268
    %v324 = vpack.c.b16 %v279, %v274
    %v325 = vpack.c.b16 %v280, %v275
    %v326 = vpack.c.b16 %v281, %v276
    %v327 = vpack.c.b16 %v282, %v277
    %v328 = vpack.c.b16 %v283, %v278
    %v329 = vpack.c.b16 %v289, %v284
    %v330 = vpack.c.b16 %v290, %v285
    %v331 = vpack.c.b16 %v291, %v286
    %v332 = vpack.c.b16 %v292, %v287
    %v333 = vpack.c.b16 %v293, %v288
    %374 = vmatpush.bf16.msra.mxu0 %v329
    %375 = vmatpush.bf16.msra.mxu0 %v324
    %376 = vmatpush.bf16.msra.mxu0 %v319
    %377 = vmatpush.bf16.msra.mxu0 %v314
    %378 = vmatpush.bf16.msra.mxu0 %v309
    %379 = vmatpush.bf16.msra.mxu0 %v304
    %380 = vmatpush.bf16.msra.mxu0 %v299
    %381 = vmatpush.bf16.msra.mxu0 %v294
    %382 = vmatmul.bf16.gmra.mxu0 %v117
    %v383 = vpop.f32.mrf.mxu0
    %v384 = vadd.f32 0.0, %v383
    %v385 = vpop.f32.mrf.mxu0
    %386 = vdwg.mxu0
    %387 = vmatpush.bf16.msra.mxu0 %v330
    %388 = vmatpush.bf16.msra.mxu0 %v325
    %389 = vmatpush.bf16.msra.mxu0 %v320
    %390 = vmatpush.bf16.msra.mxu0 %v315
    %391 = vmatpush.bf16.msra.mxu0 %v310
    %392 = vmatpush.bf16.msra.mxu0 %v305
    %393 = vmatpush.bf16.msra.mxu0 %v300
    %394 = vmatpush.bf16.msra.mxu0 %v295
    %395 = vmatmul.bf16.gmra.mxu0 %v117
    %v396 = vpop.f32.mrf.mxu0
    %v397 = vadd.f32 0.0, %v396
    %v398 = vpop.f32.mrf.mxu0
    %399 = vdwg.mxu0
    %400 = vmatpush.bf16.msra.mxu0 %v331
    %401 = vmatpush.bf16.msra.mxu0 %v326
    %402 = vmatpush.bf16.msra.mxu0 %v321
    %403 = vmatpush.bf16.msra.mxu0 %v316
    %404 = vmatpush.bf16.msra.mxu0 %v311
    %405 = vmatpush.bf16.msra.mxu0 %v306
    %406 = vmatpush.bf16.msra.mxu0 %v301
    %407 = vmatpush.bf16.msra.mxu0 %v296
    %408 = vmatmul.bf16.gmra.mxu0 %v117
    %v409 = vpop.f32.mrf.mxu0
    %v410 = vadd.f32 0.0, %v409
    %v411 = vpop.f32.mrf.mxu0
    %412 = vdwg.mxu0
    %413 = vmatpush.bf16.msra.mxu0 %v332
    %414 = vmatpush.bf16.msra.mxu0 %v327
    %415 = vmatpush.bf16.msra.mxu0 %v322
    %416 = vmatpush.bf16.msra.mxu0 %v317
    %417 = vmatpush.bf16.msra.mxu0 %v312
    %418 = vmatpush.bf16.msra.mxu0 %v307
    %419 = vmatpush.bf16.msra.mxu0 %v302
    %420 = vmatpush.bf16.msra.mxu0 %v297
    %421 = vmatmul.bf16.gmra.mxu0 %v117
    %v422 = vpop.f32.mrf.mxu0
    %v423 = vadd.f32 0.0, %v422
    %v424 = vpop.f32.mrf.mxu0
    %425 = vdwg.mxu0
    %426 = vmatpush.bf16.msra.mxu0 %v333
    %427 = vmatpush.bf16.msra.mxu0 %v328
    %428 = vmatpush.bf16.msra.mxu0 %v323
    %429 = vmatpush.bf16.msra.mxu0 %v318
    %430 = vmatpush.bf16.msra.mxu0 %v313
    %431 = vmatpush.bf16.msra.mxu0 %v308
    %432 = vmatpush.bf16.msra.mxu0 %v303
    %433 = vmatpush.bf16.msra.mxu0 %v298
    %434 = vmatmul.bf16.gmra.mxu0 %v117
    %v435 = vpop.f32.mrf.mxu0
    %v436 = vadd.f32 0.0, %v435
    %v437 = vpop.f32.mrf.mxu0
    %438 = vdwg.mxu0
    %v439 = vld [vmem:[#allocation2] sm:$0xff]
    %v440 = vld [vmem:[#allocation2 + $0x8] sm:$0xf]
    %v441 = vld [vmem:[#allocation2 + $0xc] sm:$0xff]
    %v442 = vld [vmem:[#allocation2 + $0x14] sm:$0xf]
    %v443 = vld [vmem:[#allocation2 + $0x18] sm:$0xff]
    %v444 = vld [vmem:[#allocation2 + $0x20] sm:$0xf]
    %v445 = vld [vmem:[#allocation2 + $0x24] sm:$0xff]
    %v446 = vld [vmem:[#allocation2 + $0x2c] sm:$0xf]
    %v447 = vld [vmem:[#allocation2 + $0x30] sm:$0xff]
    %v448 = vld [vmem:[#allocation2 + $0x38] sm:$0xf]
    %v449 = vld [vmem:[#allocation2 + $0x3c] sm:$0xff]
    %v450 = vld [vmem:[#allocation2 + $0x44] sm:$0xf]
    %v451 = vld [vmem:[#allocation2 + $0x48] sm:$0xff]
    %v452 = vld [vmem:[#allocation2 + $0x50] sm:$0xf]
    %v453 = vld [vmem:[#allocation2 + $0x54] sm:$0xff]
    %v454 = vld [vmem:[#allocation2 + $0x5c] sm:$0xf]
    %v455 = vld [vmem:[#allocation2 + $0x60] sm:$0xff]
    %v456 = vld [vmem:[#allocation2 + $0x68] sm:$0xf]
    %v457 = vld [vmem:[#allocation2 + $0x6c] sm:$0xff]
    %v458 = vld [vmem:[#allocation2 + $0x74] sm:$0xf]
    %v459 = vld [vmem:[#allocation2 + $0x78] sm:$0xff]
    %v460 = vld [vmem:[#allocation2 + $0x80] sm:$0xf]
    %v461 = vld [vmem:[#allocation2 + $0x84] sm:$0xff]
    %v462 = vld [vmem:[#allocation2 + $0x8c] sm:$0xf]
    %v463 = vld [vmem:[#allocation2 + $0x90] sm:$0xff]
    %v464 = vld [vmem:[#allocation2 + $0x98] sm:$0xf]
    %v465 = vld [vmem:[#allocation2 + $0x9c] sm:$0xff]
    %v466 = vld [vmem:[#allocation2 + $0xa4] sm:$0xf]
    %v467 = vld [vmem:[#allocation2 + $0xa8] sm:$0xff]
    %v468 = vld [vmem:[#allocation2 + $0xb0] sm:$0xf]
    %v469 = vld [vmem:[#allocation2 + $0xb4] sm:$0xff]
    %v470 = vld [vmem:[#allocation2 + $0xbc] sm:$0xf]
    %v471 = vld [vmem:[%s3] sm:$0x7]
    %v473 = vperm.slane %v471, 0
    %v474 = vperm.slane %v471, 1
    %v475 = vperm.slane %v471, 2
    %v511 = vunpack.c.l.b16 %v439
    %v512 = vunpack.c.h.b16 %v439
    %v513 = vunpack.c.l.b16 %v440
    %v514 = vunpack.c.l.b16 %v441
    %v515 = vunpack.c.h.b16 %v441
    %v516 = vunpack.c.l.b16 %v442
    %v517 = vunpack.c.l.b16 %v443
    %v518 = vunpack.c.h.b16 %v443
    %v519 = vunpack.c.l.b16 %v444
    %v520 = vunpack.c.l.b16 %v445
    %v521 = vunpack.c.h.b16 %v445
    %v522 = vunpack.c.l.b16 %v446
    %v523 = vunpack.c.l.b16 %v447
    %v524 = vunpack.c.h.b16 %v447
    %v525 = vunpack.c.l.b16 %v448
    %v526 = vunpack.c.l.b16 %v449
    %v527 = vunpack.c.h.b16 %v449
    %v528 = vunpack.c.l.b16 %v450
    %v529 = vunpack.c.l.b16 %v451
    %v530 = vunpack.c.h.b16 %v451
    %v531 = vunpack.c.l.b16 %v452
    %v532 = vunpack.c.l.b16 %v453
    %v533 = vunpack.c.h.b16 %v453
    %v534 = vunpack.c.l.b16 %v454
    %v535 = vunpack.c.l.b16 %v455
    %v536 = vunpack.c.h.b16 %v455
    %v537 = vunpack.c.l.b16 %v456
    %v538 = vunpack.c.l.b16 %v457
    %v539 = vunpack.c.h.b16 %v457
    %v540 = vunpack.c.l.b16 %v458
    %v541 = vunpack.c.l.b16 %v459
    %v542 = vunpack.c.h.b16 %v459
    %v543 = vunpack.c.l.b16 %v460
    %v544 = vunpack.c.l.b16 %v461
    %v545 = vunpack.c.h.b16 %v461
    %v546 = vunpack.c.l.b16 %v462
    %v547 = vunpack.c.l.b16 %v463
    %v548 = vunpack.c.h.b16 %v463
    %v549 = vunpack.c.l.b16 %v464
    %v550 = vunpack.c.l.b16 %v465
    %v551 = vunpack.c.h.b16 %v465
    %v552 = vunpack.c.l.b16 %v466
    %v553 = vunpack.c.l.b16 %v467
    %v554 = vunpack.c.h.b16 %v467
    %v555 = vunpack.c.l.b16 %v468
    %v556 = vunpack.c.l.b16 %v469
    %v557 = vunpack.c.h.b16 %v469
    %v558 = vunpack.c.l.b16 %v470
    %v559 = vpack.c.b16 %v514, %v511
    %v560 = vpack.c.b16 %v515, %v512
    %v561 = vpack.c.b16 %v516, %v513
    %v562 = vpack.c.b16 %v520, %v517
    %v563 = vpack.c.b16 %v521, %v518
    %v564 = vpack.c.b16 %v522, %v519
    %v565 = vpack.c.b16 %v526, %v523
    %v566 = vpack.c.b16 %v527, %v524
    %v567 = vpack.c.b16 %v528, %v525
    %v568 = vpack.c.b16 %v532, %v529
    %v569 = vpack.c.b16 %v533, %v530
    %v570 = vpack.c.b16 %v534, %v531
    %v571 = vpack.c.b16 %v538, %v535
    %v572 = vpack.c.b16 %v539, %v536
    %v573 = vpack.c.b16 %v540, %v537
    %v574 = vpack.c.b16 %v544, %v541
    %v575 = vpack.c.b16 %v545, %v542
    %v576 = vpack.c.b16 %v546, %v543
    %v577 = vpack.c.b16 %v550, %v547
    %v578 = vpack.c.b16 %v551, %v548
    %v579 = vpack.c.b16 %v552, %v549
    %v580 = vpack.c.b16 %v556, %v553
    %v581 = vpack.c.b16 %v557, %v554
    %v582 = vpack.c.b16 %v558, %v555
    %607 = vmatpush.bf16.msra.mxu0 %v580
    %608 = vmatpush.bf16.msra.mxu0 %v577
    %609 = vmatpush.bf16.msra.mxu0 %v574
    %610 = vmatpush.bf16.msra.mxu0 %v571
    %611 = vmatpush.bf16.msra.mxu0 %v568
    %612 = vmatpush.bf16.msra.mxu0 %v565
    %613 = vmatpush.bf16.msra.mxu0 %v562
    %614 = vmatpush.bf16.msra.mxu0 %v559
    %615 = vmatmul.bf16.gmra.mxu0 %v116
    %v616 = vpop.f32.mrf.mxu0
    %v617 = vadd.f32 %v473, %v616
    %v618 = vpop.f32.mrf.mxu0
    %619 = vdwg.mxu0
    %620 = vmatpush.bf16.msra.mxu0 %v581
    %621 = vmatpush.bf16.msra.mxu0 %v578
    %622 = vmatpush.bf16.msra.mxu0 %v575
    %623 = vmatpush.bf16.msra.mxu0 %v572
    %624 = vmatpush.bf16.msra.mxu0 %v569
    %625 = vmatpush.bf16.msra.mxu0 %v566
    %626 = vmatpush.bf16.msra.mxu0 %v563
    %627 = vmatpush.bf16.msra.mxu0 %v560
    %628 = vmatmul.bf16.gmra.mxu0 %v116
    %v629 = vpop.f32.mrf.mxu0
    %v630 = vadd.f32 %v474, %v629
    %v631 = vpop.f32.mrf.mxu0
    %632 = vdwg.mxu0
    %633 = vmatpush.bf16.msra.mxu0 %v582
    %634 = vmatpush.bf16.msra.mxu0 %v579
    %635 = vmatpush.bf16.msra.mxu0 %v576
    %636 = vmatpush.bf16.msra.mxu0 %v573
    %637 = vmatpush.bf16.msra.mxu0 %v570
    %638 = vmatpush.bf16.msra.mxu0 %v567
    %639 = vmatpush.bf16.msra.mxu0 %v564
    %640 = vmatpush.bf16.msra.mxu0 %v561
    %641 = vmatmul.bf16.gmra.mxu0 %v116
    %v642 = vpop.f32.mrf.mxu0
    %v643 = vadd.f32 %v475, %v642
    %v644 = vpop.f32.mrf.mxu0
    %645 = vdwg.mxu0
    %v646 = vmax.f32 %v617, 0.0
    %v647 = vmax.f32 %v630, 0.0
    %v648 = vmax.f32 %v643, 0.0
    %v649 = vpack.c.bf16 %v646, %v646
    %v650 = vpack.c.bf16 %v647, %v647
    %v651 = vpack.c.bf16 %v648, %v648
    %v652 = vld [vmem:[#allocation4] sm:$0xff]
    %v653 = vld [vmem:[#allocation4 + $0x8] sm:$0xff]
    %v654 = vld [vmem:[#allocation4 + $0x10] sm:$0xf]
    %v655 = vld [vmem:[#allocation4 + $0x14] sm:$0xff]
    %v656 = vld [vmem:[#allocation4 + $0x1c] sm:$0xff]
    %v657 = vld [vmem:[#allocation4 + $0x24] sm:$0xf]
    %v658 = vld [vmem:[#allocation4 + $0x28] sm:$0xff]
    %v659 = vld [vmem:[#allocation4 + $0x30] sm:$0xff]
    %v660 = vld [vmem:[#allocation4 + $0x38] sm:$0xf]
    %v661 = vld [vmem:[#allocation4 + $0x3c] sm:$0xff]
    %v662 = vld [vmem:[#allocation4 + $0x44] sm:$0xff]
    %v663 = vld [vmem:[#allocation4 + $0x4c] sm:$0xf]
    %v664 = vld [vmem:[#allocation4 + $0x50] sm:$0xff]
    %v665 = vld [vmem:[#allocation4 + $0x58] sm:$0xff]
    %v666 = vld [vmem:[#allocation4 + $0x60] sm:$0xf]
    %v667 = vld [vmem:[#allocation4 + $0x64] sm:$0xff]
    %v668 = vld [vmem:[#allocation4 + $0x6c] sm:$0xff]
    %v669 = vld [vmem:[#allocation4 + $0x74] sm:$0xf]
    %v670 = vld [vmem:[#allocation4 + $0x78] sm:$0xff]
    %v671 = vld [vmem:[#allocation4 + $0x80] sm:$0xff]
    %v672 = vld [vmem:[#allocation4 + $0x88] sm:$0xf]
    %v673 = vld [vmem:[#allocation4 + $0x8c] sm:$0xff]
    %v674 = vld [vmem:[#allocation4 + $0x94] sm:$0xff]
    %v675 = vld [vmem:[#allocation4 + $0x9c] sm:$0xf]
    %v676 = vld [vmem:[#allocation4 + $0xa0] sm:$0xff]
    %v677 = vld [vmem:[#allocation4 + $0xa8] sm:$0xff]
    %v678 = vld [vmem:[#allocation4 + $0xb0] sm:$0xf]
    %v679 = vld [vmem:[#allocation4 + $0xb4] sm:$0xff]
    %v680 = vld [vmem:[#allocation4 + $0xbc] sm:$0xff]
    %v681 = vld [vmem:[#allocation4 + $0xc4] sm:$0xf]
    %v682 = vld [vmem:[#allocation4 + $0xc8] sm:$0xff]
    %v683 = vld [vmem:[#allocation4 + $0xd0] sm:$0xff]
    %v684 = vld [vmem:[#allocation4 + $0xd8] sm:$0xf]
    %v685 = vld [vmem:[#allocation4 + $0xdc] sm:$0xff]
    %v686 = vld [vmem:[#allocation4 + $0xe4] sm:$0xff]
    %v687 = vld [vmem:[#allocation4 + $0xec] sm:$0xf]
    %v688 = vld [vmem:[#allocation4 + $0xf0] sm:$0xff]
    %v689 = vld [vmem:[#allocation4 + $0xf8] sm:$0xff]
    %v690 = vld [vmem:[#allocation4 + $0x100] sm:$0xf]
    %v691 = vld [vmem:[#allocation4 + $0x104] sm:$0xff]
    %v692 = vld [vmem:[#allocation4 + $0x10c] sm:$0xff]
    %v693 = vld [vmem:[#allocation4 + $0x114] sm:$0xf]
    %v694 = vld [vmem:[#allocation4 + $0x118] sm:$0xff]
    %v695 = vld [vmem:[#allocation4 + $0x120] sm:$0xff]
    %v696 = vld [vmem:[#allocation4 + $0x128] sm:$0xf]
    %v697 = vld [vmem:[#allocation4 + $0x12c] sm:$0xff]
    %v698 = vld [vmem:[#allocation4 + $0x134] sm:$0xff]
    %v699 = vld [vmem:[#allocation4 + $0x13c] sm:$0xf]
    %v700 = vld [vmem:[#allocation4 + $0x140] sm:$0xff]
    %v701 = vld [vmem:[#allocation4 + $0x148] sm:$0xff]
    %v702 = vld [vmem:[#allocation4 + $0x150] sm:$0xf]
    %v703 = vld [vmem:[#allocation4 + $0x154] sm:$0xff]
    %v704 = vld [vmem:[#allocation4 + $0x15c] sm:$0xff]
    %v705 = vld [vmem:[#allocation4 + $0x164] sm:$0xf]
    %v706 = vld [vmem:[#allocation4 + $0x168] sm:$0xff]
    %v707 = vld [vmem:[#allocation4 + $0x170] sm:$0xff]
    %v708 = vld [vmem:[#allocation4 + $0x178] sm:$0xf]
    %v709 = vld [vmem:[#allocation4 + $0x17c] sm:$0xff]
    %v710 = vld [vmem:[#allocation4 + $0x184] sm:$0xff]
    %v711 = vld [vmem:[#allocation4 + $0x18c] sm:$0xf]
    %v712 = vld [vmem:[#allocation4 + $0x190] sm:$0xff]
    %v713 = vld [vmem:[#allocation4 + $0x198] sm:$0xff]
    %v714 = vld [vmem:[#allocation4 + $0x1a0] sm:$0xf]
    %v715 = vld [vmem:[#allocation4 + $0x1a4] sm:$0xff]
    %v716 = vld [vmem:[#allocation4 + $0x1ac] sm:$0xff]
    %v717 = vld [vmem:[#allocation4 + $0x1b4] sm:$0xf]
    %v718 = vld [vmem:[#allocation4 + $0x1b8] sm:$0xff]
    %v719 = vld [vmem:[#allocation4 + $0x1c0] sm:$0xff]
    %v720 = vld [vmem:[#allocation4 + $0x1c8] sm:$0xf]
    %v721 = vld [vmem:[#allocation4 + $0x1cc] sm:$0xff]
    %v722 = vld [vmem:[#allocation4 + $0x1d4] sm:$0xff]
    %v723 = vld [vmem:[#allocation4 + $0x1dc] sm:$0xf]
    %v724 = vld [vmem:[#allocation4 + $0x1e0] sm:$0xff]
    %v725 = vld [vmem:[#allocation4 + $0x1e8] sm:$0xff]
    %v726 = vld [vmem:[#allocation4 + $0x1f0] sm:$0xf]
    %v727 = vld [vmem:[#allocation4 + $0x1f4] sm:$0xff]
    %v728 = vld [vmem:[#allocation4 + $0x1fc] sm:$0xff]
    %v729 = vld [vmem:[#allocation4 + $0x204] sm:$0xf]
    %v730 = vld [vmem:[#allocation4 + $0x208] sm:$0xff]
    %v731 = vld [vmem:[#allocation4 + $0x210] sm:$0xff]
    %v732 = vld [vmem:[#allocation4 + $0x218] sm:$0xf]
    %v733 = vld [vmem:[#allocation4 + $0x21c] sm:$0xff]
    %v734 = vld [vmem:[#allocation4 + $0x224] sm:$0xff]
    %v735 = vld [vmem:[#allocation4 + $0x22c] sm:$0xf]
    %v736 = vld [vmem:[#allocation4 + $0x230] sm:$0xff]
    %v737 = vld [vmem:[#allocation4 + $0x238] sm:$0xff]
    %v738 = vld [vmem:[#allocation4 + $0x240] sm:$0xf]
    %v739 = vld [vmem:[#allocation4 + $0x244] sm:$0xff]
    %v740 = vld [vmem:[#allocation4 + $0x24c] sm:$0xff]
    %v741 = vld [vmem:[#allocation4 + $0x254] sm:$0xf]
    %v742 = vld [vmem:[#allocation4 + $0x258] sm:$0xff]
    %v743 = vld [vmem:[#allocation4 + $0x260] sm:$0xff]
    %v744 = vld [vmem:[#allocation4 + $0x268] sm:$0xf]
    %v745 = vld [vmem:[#allocation4 + $0x26c] sm:$0xff]
    %v746 = vld [vmem:[#allocation4 + $0x274] sm:$0xff]
    %v747 = vld [vmem:[#allocation4 + $0x27c] sm:$0xf]
    %v748 = vld [vmem:[#allocation4 + $0x280] sm:$0xff]
    %v749 = vld [vmem:[#allocation4 + $0x288] sm:$0xff]
    %v750 = vld [vmem:[#allocation4 + $0x290] sm:$0xf]
    %v751 = vld [vmem:[#allocation4 + $0x294] sm:$0xff]
    %v752 = vld [vmem:[#allocation4 + $0x29c] sm:$0xff]
    %v753 = vld [vmem:[#allocation4 + $0x2a4] sm:$0xf]
    %v754 = vld [vmem:[#allocation4 + $0x2a8] sm:$0xff]
    %v755 = vld [vmem:[#allocation4 + $0x2b0] sm:$0xff]
    %v756 = vld [vmem:[#allocation4 + $0x2b8] sm:$0xf]
    %v757 = vld [vmem:[#allocation4 + $0x2bc] sm:$0xff]
    %v758 = vld [vmem:[#allocation4 + $0x2c4] sm:$0xff]
    %v759 = vld [vmem:[#allocation4 + $0x2cc] sm:$0xf]
    %v760 = vld [vmem:[#allocation4 + $0x2d0] sm:$0xff]
    %v761 = vld [vmem:[#allocation4 + $0x2d8] sm:$0xff]
    %v762 = vld [vmem:[#allocation4 + $0x2e0] sm:$0xf]
    %v763 = vld [vmem:[#allocation4 + $0x2e4] sm:$0xff]
    %v764 = vld [vmem:[#allocation4 + $0x2ec] sm:$0xff]
    %v765 = vld [vmem:[#allocation4 + $0x2f4] sm:$0xf]
    %v766 = vld [vmem:[#allocation4 + $0x2f8] sm:$0xff]
    %v767 = vld [vmem:[#allocation4 + $0x300] sm:$0xff]
    %v768 = vld [vmem:[#allocation4 + $0x308] sm:$0xf]
    %v769 = vld [vmem:[#allocation4 + $0x30c] sm:$0xff]
    %v770 = vld [vmem:[#allocation4 + $0x314] sm:$0xff]
    %v771 = vld [vmem:[#allocation4 + $0x31c] sm:$0xf]
    %v772 = vld [vmem:[#allocation4 + $0x320] sm:$0xff]
    %v773 = vld [vmem:[#allocation4 + $0x328] sm:$0xff]
    %v774 = vld [vmem:[#allocation4 + $0x330] sm:$0xf]
    %v775 = vld [vmem:[#allocation4 + $0x334] sm:$0xff]
    %v776 = vld [vmem:[#allocation4 + $0x33c] sm:$0xff]
    %v777 = vld [vmem:[#allocation4 + $0x344] sm:$0xf]
    %v778 = vld [vmem:[#allocation4 + $0x348] sm:$0xff]
    %v779 = vld [vmem:[#allocation4 + $0x350] sm:$0xff]
    %v780 = vld [vmem:[#allocation4 + $0x358] sm:$0xf]
    %v781 = vld [vmem:[#allocation4 + $0x35c] sm:$0xff]
    %v782 = vld [vmem:[#allocation4 + $0x364] sm:$0xff]
    %v783 = vld [vmem:[#allocation4 + $0x36c] sm:$0xf]
    %v784 = vld [vmem:[#allocation4 + $0x370] sm:$0xff]
    %v785 = vld [vmem:[#allocation4 + $0x378] sm:$0xff]
    %v786 = vld [vmem:[#allocation4 + $0x380] sm:$0xf]
    %v787 = vld [vmem:[#allocation4 + $0x384] sm:$0xff]
    %v788 = vld [vmem:[#allocation4 + $0x38c] sm:$0xff]
    %v789 = vld [vmem:[#allocation4 + $0x394] sm:$0xf]
    %v790 = vld [vmem:[#allocation4 + $0x398] sm:$0xff]
    %v791 = vld [vmem:[#allocation4 + $0x3a0] sm:$0xff]
    %v792 = vld [vmem:[#allocation4 + $0x3a8] sm:$0xf]
    %v793 = vld [vmem:[#allocation4 + $0x3ac] sm:$0xff]
    %v794 = vld [vmem:[#allocation4 + $0x3b4] sm:$0xff]
    %v795 = vld [vmem:[#allocation4 + $0x3bc] sm:$0xf]
    %v940 = vunpack.c.l.b16 %v652
    %v941 = vunpack.c.h.b16 %v652
    %v942 = vunpack.c.l.b16 %v653
    %v943 = vunpack.c.h.b16 %v653
    %v944 = vunpack.c.l.b16 %v654
    %v945 = vunpack.c.l.b16 %v655
    %v946 = vunpack.c.h.b16 %v655
    %v947 = vunpack.c.l.b16 %v656
    %v948 = vunpack.c.h.b16 %v656
    %v949 = vunpack.c.l.b16 %v657
    %v950 = vunpack.c.l.b16 %v658
    %v951 = vunpack.c.h.b16 %v658
    %v952 = vunpack.c.l.b16 %v659
    %v953 = vunpack.c.h.b16 %v659
    %v954 = vunpack.c.l.b16 %v660
    %v955 = vunpack.c.l.b16 %v661
    %v956 = vunpack.c.h.b16 %v661
    %v957 = vunpack.c.l.b16 %v662
    %v958 = vunpack.c.h.b16 %v662
    %v959 = vunpack.c.l.b16 %v663
    %v960 = vunpack.c.l.b16 %v664
    %v961 = vunpack.c.h.b16 %v664
    %v962 = vunpack.c.l.b16 %v665
    %v963 = vunpack.c.h.b16 %v665
    %v964 = vunpack.c.l.b16 %v666
    %v965 = vunpack.c.l.b16 %v667
    %v966 = vunpack.c.h.b16 %v667
    %v967 = vunpack.c.l.b16 %v668
    %v968 = vunpack.c.h.b16 %v668
    %v969 = vunpack.c.l.b16 %v669
    %v970 = vunpack.c.l.b16 %v670
    %v971 = vunpack.c.h.b16 %v670
    %v972 = vunpack.c.l.b16 %v671
    %v973 = vunpack.c.h.b16 %v671
    %v974 = vunpack.c.l.b16 %v672
    %v975 = vunpack.c.l.b16 %v673
    %v976 = vunpack.c.h.b16 %v673
    %v977 = vunpack.c.l.b16 %v674
    %v978 = vunpack.c.h.b16 %v674
    %v979 = vunpack.c.l.b16 %v675
    %v980 = vunpack.c.l.b16 %v676
    %v981 = vunpack.c.h.b16 %v676
    %v982 = vunpack.c.l.b16 %v677
    %v983 = vunpack.c.h.b16 %v677
    %v984 = vunpack.c.l.b16 %v678
    %v985 = vunpack.c.l.b16 %v679
    %v986 = vunpack.c.h.b16 %v679
    %v987 = vunpack.c.l.b16 %v680
    %v988 = vunpack.c.h.b16 %v680
    %v989 = vunpack.c.l.b16 %v681
    %v990 = vunpack.c.l.b16 %v682
    %v991 = vunpack.c.h.b16 %v682
    %v992 = vunpack.c.l.b16 %v683
    %v993 = vunpack.c.h.b16 %v683
    %v994 = vunpack.c.l.b16 %v684
    %v995 = vunpack.c.l.b16 %v685
    %v996 = vunpack.c.h.b16 %v685
    %v997 = vunpack.c.l.b16 %v686
    %v998 = vunpack.c.h.b16 %v686
    %v999 = vunpack.c.l.b16 %v687
    %v1000 = vunpack.c.l.b16 %v688
    %v1001 = vunpack.c.h.b16 %v688
    %v1002 = vunpack.c.l.b16 %v689
    %v1003 = vunpack.c.h.b16 %v689
    %v1004 = vunpack.c.l.b16 %v690
    %v1005 = vunpack.c.l.b16 %v691
    %v1006 = vunpack.c.h.b16 %v691
    %v1007 = vunpack.c.l.b16 %v692
    %v1008 = vunpack.c.h.b16 %v692
    %v1009 = vunpack.c.l.b16 %v693
    %v1010 = vunpack.c.l.b16 %v694
    %v1011 = vunpack.c.h.b16 %v694
    %v1012 = vunpack.c.l.b16 %v695
    %v1013 = vunpack.c.h.b16 %v695
    %v1014 = vunpack.c.l.b16 %v696
    %v1015 = vunpack.c.l.b16 %v697
    %v1016 = vunpack.c.h.b16 %v697
    %v1017 = vunpack.c.l.b16 %v698
    %v1018 = vunpack.c.h.b16 %v698
    %v1019 = vunpack.c.l.b16 %v699
    %v1020 = vunpack.c.l.b16 %v700
    %v1021 = vunpack.c.h.b16 %v700
    %v1022 = vunpack.c.l.b16 %v701
    %v1023 = vunpack.c.h.b16 %v701
    %v1024 = vunpack.c.l.b16 %v702
    %v1025 = vunpack.c.l.b16 %v703
    %v1026 = vunpack.c.h.b16 %v703
    %v1027 = vunpack.c.l.b16 %v704
    %v1028 = vunpack.c.h.b16 %v704
    %v1029 = vunpack.c.l.b16 %v705
    %v1030 = vunpack.c.l.b16 %v706
    %v1031 = vunpack.c.h.b16 %v706
    %v1032 = vunpack.c.l.b16 %v707
    %v1033 = vunpack.c.h.b16 %v707
    %v1034 = vunpack.c.l.b16 %v708
    %v1035 = vunpack.c.l.b16 %v709
    %v1036 = vunpack.c.h.b16 %v709
    %v1037 = vunpack.c.l.b16 %v710
    %v1038 = vunpack.c.h.b16 %v710
    %v1039 = vunpack.c.l.b16 %v711
    %v1040 = vunpack.c.l.b16 %v712
    %v1041 = vunpack.c.h.b16 %v712
    %v1042 = vunpack.c.l.b16 %v713
    %v1043 = vunpack.c.h.b16 %v713
    %v1044 = vunpack.c.l.b16 %v714
    %v1045 = vunpack.c.l.b16 %v715
    %v1046 = vunpack.c.h.b16 %v715
    %v1047 = vunpack.c.l.b16 %v716
    %v1048 = vunpack.c.h.b16 %v716
    %v1049 = vunpack.c.l.b16 %v717
    %v1050 = vunpack.c.l.b16 %v718
    %v1051 = vunpack.c.h.b16 %v718
    %v1052 = vunpack.c.l.b16 %v719
    %v1053 = vunpack.c.h.b16 %v719
    %v1054 = vunpack.c.l.b16 %v720
    %v1055 = vunpack.c.l.b16 %v721
    %v1056 = vunpack.c.h.b16 %v721
    %v1057 = vunpack.c.l.b16 %v722
    %v1058 = vunpack.c.h.b16 %v722
    %v1059 = vunpack.c.l.b16 %v723
    %v1060 = vunpack.c.l.b16 %v724
    %v1061 = vunpack.c.h.b16 %v724
    %v1062 = vunpack.c.l.b16 %v725
    %v1063 = vunpack.c.h.b16 %v725
    %v1064 = vunpack.c.l.b16 %v726
    %v1065 = vunpack.c.l.b16 %v727
    %v1066 = vunpack.c.h.b16 %v727
    %v1067 = vunpack.c.l.b16 %v728
    %v1068 = vunpack.c.h.b16 %v728
    %v1069 = vunpack.c.l.b16 %v729
    %v1070 = vunpack.c.l.b16 %v730
    %v1071 = vunpack.c.h.b16 %v730
    %v1072 = vunpack.c.l.b16 %v731
    %v1073 = vunpack.c.h.b16 %v731
    %v1074 = vunpack.c.l.b16 %v732
    %v1075 = vunpack.c.l.b16 %v733
    %v1076 = vunpack.c.h.b16 %v733
    %v1077 = vunpack.c.l.b16 %v734
    %v1078 = vunpack.c.h.b16 %v734
    %v1079 = vunpack.c.l.b16 %v735
    %v1080 = vunpack.c.l.b16 %v736
    %v1081 = vunpack.c.h.b16 %v736
    %v1082 = vunpack.c.l.b16 %v737
    %v1083 = vunpack.c.h.b16 %v737
    %v1084 = vunpack.c.l.b16 %v738
    %v1085 = vunpack.c.l.b16 %v739
    %v1086 = vunpack.c.h.b16 %v739
    %v1087 = vunpack.c.l.b16 %v740
    %v1088 = vunpack.c.h.b16 %v740
    %v1089 = vunpack.c.l.b16 %v741
    %v1090 = vunpack.c.l.b16 %v742
    %v1091 = vunpack.c.h.b16 %v742
    %v1092 = vunpack.c.l.b16 %v743
    %v1093 = vunpack.c.h.b16 %v743
    %v1094 = vunpack.c.l.b16 %v744
    %v1095 = vunpack.c.l.b16 %v745
    %v1096 = vunpack.c.h.b16 %v745
    %v1097 = vunpack.c.l.b16 %v746
    %v1098 = vunpack.c.h.b16 %v746
    %v1099 = vunpack.c.l.b16 %v747
    %v1100 = vunpack.c.l.b16 %v748
    %v1101 = vunpack.c.h.b16 %v748
    %v1102 = vunpack.c.l.b16 %v749
    %v1103 = vunpack.c.h.b16 %v749
    %v1104 = vunpack.c.l.b16 %v750
    %v1105 = vunpack.c.l.b16 %v751
    %v1106 = vunpack.c.h.b16 %v751
    %v1107 = vunpack.c.l.b16 %v752
    %v1108 = vunpack.c.h.b16 %v752
    %v1109 = vunpack.c.l.b16 %v753
    %v1110 = vunpack.c.l.b16 %v754
    %v1111 = vunpack.c.h.b16 %v754
    %v1112 = vunpack.c.l.b16 %v755
    %v1113 = vunpack.c.h.b16 %v755
    %v1114 = vunpack.c.l.b16 %v756
    %v1115 = vunpack.c.l.b16 %v757
    %v1116 = vunpack.c.h.b16 %v757
    %v1117 = vunpack.c.l.b16 %v758
    %v1118 = vunpack.c.h.b16 %v758
    %v1119 = vunpack.c.l.b16 %v759
    %v1120 = vunpack.c.l.b16 %v760
    %v1121 = vunpack.c.h.b16 %v760
    %v1122 = vunpack.c.l.b16 %v761
    %v1123 = vunpack.c.h.b16 %v761
    %v1124 = vunpack.c.l.b16 %v762
    %v1125 = vunpack.c.l.b16 %v763
    %v1126 = vunpack.c.h.b16 %v763
    %v1127 = vunpack.c.l.b16 %v764
    %v1128 = vunpack.c.h.b16 %v764
    %v1129 = vunpack.c.l.b16 %v765
    %v1130 = vunpack.c.l.b16 %v766
    %v1131 = vunpack.c.h.b16 %v766
    %v1132 = vunpack.c.l.b16 %v767
    %v1133 = vunpack.c.h.b16 %v767
    %v1134 = vunpack.c.l.b16 %v768
    %v1135 = vunpack.c.l.b16 %v769
    %v1136 = vunpack.c.h.b16 %v769
    %v1137 = vunpack.c.l.b16 %v770
    %v1138 = vunpack.c.h.b16 %v770
    %v1139 = vunpack.c.l.b16 %v771
    %v1140 = vunpack.c.l.b16 %v772
    %v1141 = vunpack.c.h.b16 %v772
    %v1142 = vunpack.c.l.b16 %v773
    %v1143 = vunpack.c.h.b16 %v773
    %v1144 = vunpack.c.l.b16 %v774
    %v1145 = vunpack.c.l.b16 %v775
    %v1146 = vunpack.c.h.b16 %v775
    %v1147 = vunpack.c.l.b16 %v776
    %v1148 = vunpack.c.h.b16 %v776
    %v1149 = vunpack.c.l.b16 %v777
    %v1150 = vunpack.c.l.b16 %v778
    %v1151 = vunpack.c.h.b16 %v778
    %v1152 = vunpack.c.l.b16 %v779
    %v1153 = vunpack.c.h.b16 %v779
    %v1154 = vunpack.c.l.b16 %v780
    %v1155 = vunpack.c.l.b16 %v781
    %v1156 = vunpack.c.h.b16 %v781
    %v1157 = vunpack.c.l.b16 %v782
    %v1158 = vunpack.c.h.b16 %v782
    %v1159 = vunpack.c.l.b16 %v783
    %v1160 = vunpack.c.l.b16 %v784
    %v1161 = vunpack.c.h.b16 %v784
    %v1162 = vunpack.c.l.b16 %v785
    %v1163 = vunpack.c.h.b16 %v785
    %v1164 = vunpack.c.l.b16 %v786
    %v1165 = vunpack.c.l.b16 %v787
    %v1166 = vunpack.c.h.b16 %v787
    %v1167 = vunpack.c.l.b16 %v788
    %v1168 = vunpack.c.h.b16 %v788
    %v1169 = vunpack.c.l.b16 %v789
    %v1170 = vunpack.c.l.b16 %v790
    %v1171 = vunpack.c.h.b16 %v790
    %v1172 = vunpack.c.l.b16 %v791
    %v1173 = vunpack.c.h.b16 %v791
    %v1174 = vunpack.c.l.b16 %v792
    %v1175 = vunpack.c.l.b16 %v793
    %v1176 = vunpack.c.h.b16 %v793
    %v1177 = vunpack.c.l.b16 %v794
    %v1178 = vunpack.c.h.b16 %v794
    %v1179 = vunpack.c.l.b16 %v795
    %v1180 = vpack.c.b16 %v945, %v940
    %v1181 = vpack.c.b16 %v946, %v941
    %v1182 = vpack.c.b16 %v947, %v942
    %v1183 = vpack.c.b16 %v948, %v943
    %v1184 = vpack.c.b16 %v949, %v944
    %v1185 = vpack.c.b16 %v955, %v950
    %v1186 = vpack.c.b16 %v956, %v951
    %v1187 = vpack.c.b16 %v957, %v952
    %v1188 = vpack.c.b16 %v958, %v953
    %v1189 = vpack.c.b16 %v959, %v954
    %v1190 = vpack.c.b16 %v965, %v960
    %v1191 = vpack.c.b16 %v966, %v961
    %v1192 = vpack.c.b16 %v967, %v962
    %v1193 = vpack.c.b16 %v968, %v963
    %v1194 = vpack.c.b16 %v969, %v964
    %v1195 = vpack.c.b16 %v975, %v970
    %v1196 = vpack.c.b16 %v976, %v971
    %v1197 = vpack.c.b16 %v977, %v972
    %v1198 = vpack.c.b16 %v978, %v973
    %v1199 = vpack.c.b16 %v979, %v974
    %v1200 = vpack.c.b16 %v985, %v980
    %v1201 = vpack.c.b16 %v986, %v981
    %v1202 = vpack.c.b16 %v987, %v982
    %v1203 = vpack.c.b16 %v988, %v983
    %v1204 = vpack.c.b16 %v989, %v984
    %v1205 = vpack.c.b16 %v995, %v990
    %v1206 = vpack.c.b16 %v996, %v991
    %v1207 = vpack.c.b16 %v997, %v992
    %v1208 = vpack.c.b16 %v998, %v993
    %v1209 = vpack.c.b16 %v999, %v994
    %v1210 = vpack.c.b16 %v1005, %v1000
    %v1211 = vpack.c.b16 %v1006, %v1001
    %v1212 = vpack.c.b16 %v1007, %v1002
    %v1213 = vpack.c.b16 %v1008, %v1003
    %v1214 = vpack.c.b16 %v1009, %v1004
    %v1215 = vpack.c.b16 %v1015, %v1010
    %v1216 = vpack.c.b16 %v1016, %v1011
    %v1217 = vpack.c.b16 %v1017, %v1012
    %v1218 = vpack.c.b16 %v1018, %v1013
    %v1219 = vpack.c.b16 %v1019, %v1014
    %v1220 = vpack.c.b16 %v1025, %v1020
    %v1221 = vpack.c.b16 %v1026, %v1021
    %v1222 = vpack.c.b16 %v1027, %v1022
    %v1223 = vpack.c.b16 %v1028, %v1023
    %v1224 = vpack.c.b16 %v1029, %v1024
    %v1225 = vpack.c.b16 %v1035, %v1030
    %v1226 = vpack.c.b16 %v1036, %v1031
    %v1227 = vpack.c.b16 %v1037, %v1032
    %v1228 = vpack.c.b16 %v1038, %v1033
    %v1229 = vpack.c.b16 %v1039, %v1034
    %v1230 = vpack.c.b16 %v1045, %v1040
    %v1231 = vpack.c.b16 %v1046, %v1041
    %v1232 = vpack.c.b16 %v1047, %v1042
    %v1233 = vpack.c.b16 %v1048, %v1043
    %v1234 = vpack.c.b16 %v1049, %v1044
    %v1235 = vpack.c.b16 %v1055, %v1050
    %v1236 = vpack.c.b16 %v1056, %v1051
    %v1237 = vpack.c.b16 %v1057, %v1052
    %v1238 = vpack.c.b16 %v1058, %v1053
    %v1239 = vpack.c.b16 %v1059, %v1054
    %v1240 = vpack.c.b16 %v1065, %v1060
    %v1241 = vpack.c.b16 %v1066, %v1061
    %v1242 = vpack.c.b16 %v1067, %v1062
    %v1243 = vpack.c.b16 %v1068, %v1063
    %v1244 = vpack.c.b16 %v1069, %v1064
    %v1245 = vpack.c.b16 %v1075, %v1070
    %v1246 = vpack.c.b16 %v1076, %v1071
    %v1247 = vpack.c.b16 %v1077, %v1072
    %v1248 = vpack.c.b16 %v1078, %v1073
    %v1249 = vpack.c.b16 %v1079, %v1074
    %v1250 = vpack.c.b16 %v1085, %v1080
    %v1251 = vpack.c.b16 %v1086, %v1081
    %v1252 = vpack.c.b16 %v1087, %v1082
    %v1253 = vpack.c.b16 %v1088, %v1083
    %v1254 = vpack.c.b16 %v1089, %v1084
    %v1255 = vpack.c.b16 %v1095, %v1090
    %v1256 = vpack.c.b16 %v1096, %v1091
    %v1257 = vpack.c.b16 %v1097, %v1092
    %v1258 = vpack.c.b16 %v1098, %v1093
    %v1259 = vpack.c.b16 %v1099, %v1094
    %v1260 = vpack.c.b16 %v1105, %v1100
    %v1261 = vpack.c.b16 %v1106, %v1101
    %v1262 = vpack.c.b16 %v1107, %v1102
    %v1263 = vpack.c.b16 %v1108, %v1103
    %v1264 = vpack.c.b16 %v1109, %v1104
    %v1265 = vpack.c.b16 %v1115, %v1110
    %v1266 = vpack.c.b16 %v1116, %v1111
    %v1267 = vpack.c.b16 %v1117, %v1112
    %v1268 = vpack.c.b16 %v1118, %v1113
    %v1269 = vpack.c.b16 %v1119, %v1114
    %v1270 = vpack.c.b16 %v1125, %v1120
    %v1271 = vpack.c.b16 %v1126, %v1121
    %v1272 = vpack.c.b16 %v1127, %v1122
    %v1273 = vpack.c.b16 %v1128, %v1123
    %v1274 = vpack.c.b16 %v1129, %v1124
    %v1275 = vpack.c.b16 %v1135, %v1130
    %v1276 = vpack.c.b16 %v1136, %v1131
    %v1277 = vpack.c.b16 %v1137, %v1132
    %v1278 = vpack.c.b16 %v1138, %v1133
    %v1279 = vpack.c.b16 %v1139, %v1134
    %v1280 = vpack.c.b16 %v1145, %v1140
    %v1281 = vpack.c.b16 %v1146, %v1141
    %v1282 = vpack.c.b16 %v1147, %v1142
    %v1283 = vpack.c.b16 %v1148, %v1143
    %v1284 = vpack.c.b16 %v1149, %v1144
    %v1285 = vpack.c.b16 %v1155, %v1150
    %v1286 = vpack.c.b16 %v1156, %v1151
    %v1287 = vpack.c.b16 %v1157, %v1152
    %v1288 = vpack.c.b16 %v1158, %v1153
    %v1289 = vpack.c.b16 %v1159, %v1154
    %v1290 = vpack.c.b16 %v1165, %v1160
    %v1291 = vpack.c.b16 %v1166, %v1161
    %v1292 = vpack.c.b16 %v1167, %v1162
    %v1293 = vpack.c.b16 %v1168, %v1163
    %v1294 = vpack.c.b16 %v1169, %v1164
    %v1295 = vpack.c.b16 %v1175, %v1170
    %v1296 = vpack.c.b16 %v1176, %v1171
    %v1297 = vpack.c.b16 %v1177, %v1172
    %v1298 = vpack.c.b16 %v1178, %v1173
    %v1299 = vpack.c.b16 %v1179, %v1174
    %1420 = vmatpush.bf16.msra.mxu0 %v1215
    %1421 = vmatpush.bf16.msra.mxu0 %v1210
    %1422 = vmatpush.bf16.msra.mxu0 %v1205
    %1423 = vmatpush.bf16.msra.mxu0 %v1200
    %1424 = vmatpush.bf16.msra.mxu0 %v1195
    %1425 = vmatpush.bf16.msra.mxu0 %v1190
    %1426 = vmatpush.bf16.msra.mxu0 %v1185
    %1427 = vmatpush.bf16.msra.mxu0 %v1180
    %1428 = vmatmul.bf16.gmra.mxu0 %v649
    %v1429 = vpop.f32.mrf.mxu0
    %v1430 = vadd.f32 %v384, %v1429
    %v1431 = vpop.f32.mrf.mxu0
    %1432 = vdwg.mxu0
    %1433 = vmatpush.bf16.msra.mxu0 %v1255
    %1434 = vmatpush.bf16.msra.mxu0 %v1250
    %1435 = vmatpush.bf16.msra.mxu0 %v1245
    %1436 = vmatpush.bf16.msra.mxu0 %v1240
    %1437 = vmatpush.bf16.msra.mxu0 %v1235
    %1438 = vmatpush.bf16.msra.mxu0 %v1230
    %1439 = vmatpush.bf16.msra.mxu0 %v1225
    %1440 = vmatpush.bf16.msra.mxu0 %v1220
    %1441 = vmatmul.bf16.gmra.mxu0 %v650
    %v1442 = vpop.f32.mrf.mxu0
    %v1443 = vadd.f32 %v1430, %v1442
    %v1444 = vpop.f32.mrf.mxu0
    %1445 = vdwg.mxu0
    %1446 = vmatpush.bf16.msra.mxu0 %v1295
    %1447 = vmatpush.bf16.msra.mxu0 %v1290
    %1448 = vmatpush.bf16.msra.mxu0 %v1285
    %1449 = vmatpush.bf16.msra.mxu0 %v1280
    %1450 = vmatpush.bf16.msra.mxu0 %v1275
    %1451 = vmatpush.bf16.msra.mxu0 %v1270
    %1452 = vmatpush.bf16.msra.mxu0 %v1265
    %1453 = vmatpush.bf16.msra.mxu0 %v1260
    %1454 = vmatmul.bf16.gmra.mxu0 %v651
    %v1455 = vpop.f32.mrf.mxu0
    %v1456 = vadd.f32 %v1443, %v1455
    %v1457 = vpop.f32.mrf.mxu0
    %1458 = vdwg.mxu0
    %1459 = vmatpush.bf16.msra.mxu0 %v1216
    %1460 = vmatpush.bf16.msra.mxu0 %v1211
    %1461 = vmatpush.bf16.msra.mxu0 %v1206
    %1462 = vmatpush.bf16.msra.mxu0 %v1201
    %1463 = vmatpush.bf16.msra.mxu0 %v1196
    %1464 = vmatpush.bf16.msra.mxu0 %v1191
    %1465 = vmatpush.bf16.msra.mxu0 %v1186
    %1466 = vmatpush.bf16.msra.mxu0 %v1181
    %1467 = vmatmul.bf16.gmra.mxu0 %v649
    %v1468 = vpop.f32.mrf.mxu0
    %v1469 = vadd.f32 %v397, %v1468
    %v1470 = vpop.f32.mrf.mxu0
    %1471 = vdwg.mxu0
    %1472 = vmatpush.bf16.msra.mxu0 %v1256
    %1473 = vmatpush.bf16.msra.mxu0 %v1251
    %1474 = vmatpush.bf16.msra.mxu0 %v1246
    %1475 = vmatpush.bf16.msra.mxu0 %v1241
    %1476 = vmatpush.bf16.msra.mxu0 %v1236
    %1477 = vmatpush.bf16.msra.mxu0 %v1231
    %1478 = vmatpush.bf16.msra.mxu0 %v1226
    %1479 = vmatpush.bf16.msra.mxu0 %v1221
    %1480 = vmatmul.bf16.gmra.mxu0 %v650
    %v1481 = vpop.f32.mrf.mxu0
    %v1482 = vadd.f32 %v1469, %v1481
    %v1483 = vpop.f32.mrf.mxu0
    %1484 = vdwg.mxu0
    %1485 = vmatpush.bf16.msra.mxu0 %v1296
    %1486 = vmatpush.bf16.msra.mxu0 %v1291
    %1487 = vmatpush.bf16.msra.mxu0 %v1286
    %1488 = vmatpush.bf16.msra.mxu0 %v1281
    %1489 = vmatpush.bf16.msra.mxu0 %v1276
    %1490 = vmatpush.bf16.msra.mxu0 %v1271
    %1491 = vmatpush.bf16.msra.mxu0 %v1266
    %1492 = vmatpush.bf16.msra.mxu0 %v1261
    %1493 = vmatmul.bf16.gmra.mxu0 %v651
    %v1494 = vpop.f32.mrf.mxu0
    %v1495 = vadd.f32 %v1482, %v1494
    %v1496 = vpop.f32.mrf.mxu0
    %1497 = vdwg.mxu0
    %1498 = vmatpush.bf16.msra.mxu0 %v1217
    %1499 = vmatpush.bf16.msra.mxu0 %v1212
    %1500 = vmatpush.bf16.msra.mxu0 %v1207
    %1501 = vmatpush.bf16.msra.mxu0 %v1202
    %1502 = vmatpush.bf16.msra.mxu0 %v1197
    %1503 = vmatpush.bf16.msra.mxu0 %v1192
    %1504 = vmatpush.bf16.msra.mxu0 %v1187
    %1505 = vmatpush.bf16.msra.mxu0 %v1182
    %1506 = vmatmul.bf16.gmra.mxu0 %v649
    %v1507 = vpop.f32.mrf.mxu0
    %v1508 = vadd.f32 %v410, %v1507
    %v1509 = vpop.f32.mrf.mxu0
    %1510 = vdwg.mxu0
    %1511 = vmatpush.bf16.msra.mxu0 %v1257
    %1512 = vmatpush.bf16.msra.mxu0 %v1252
    %1513 = vmatpush.bf16.msra.mxu0 %v1247
    %1514 = vmatpush.bf16.msra.mxu0 %v1242
    %1515 = vmatpush.bf16.msra.mxu0 %v1237
    %1516 = vmatpush.bf16.msra.mxu0 %v1232
    %1517 = vmatpush.bf16.msra.mxu0 %v1227
    %1518 = vmatpush.bf16.msra.mxu0 %v1222
    %1519 = vmatmul.bf16.gmra.mxu0 %v650
    %v1520 = vpop.f32.mrf.mxu0
    %v1521 = vadd.f32 %v1508, %v1520
    %v1522 = vpop.f32.mrf.mxu0
    %1523 = vdwg.mxu0
    %1524 = vmatpush.bf16.msra.mxu0 %v1297
    %1525 = vmatpush.bf16.msra.mxu0 %v1292
    %1526 = vmatpush.bf16.msra.mxu0 %v1287
    %1527 = vmatpush.bf16.msra.mxu0 %v1282
    %1528 = vmatpush.bf16.msra.mxu0 %v1277
    %1529 = vmatpush.bf16.msra.mxu0 %v1272
    %1530 = vmatpush.bf16.msra.mxu0 %v1267
    %1531 = vmatpush.bf16.msra.mxu0 %v1262
    %1532 = vmatmul.bf16.gmra.mxu0 %v651
    %v1533 = vpop.f32.mrf.mxu0
    %v1534 = vadd.f32 %v1521, %v1533
    %v1535 = vpop.f32.mrf.mxu0
    %1536 = vdwg.mxu0
    %1537 = vmatpush.bf16.msra.mxu0 %v1218
    %1538 = vmatpush.bf16.msra.mxu0 %v1213
    %1539 = vmatpush.bf16.msra.mxu0 %v1208
    %1540 = vmatpush.bf16.msra.mxu0 %v1203
    %1541 = vmatpush.bf16.msra.mxu0 %v1198
    %1542 = vmatpush.bf16.msra.mxu0 %v1193
    %1543 = vmatpush.bf16.msra.mxu0 %v1188
    %1544 = vmatpush.bf16.msra.mxu0 %v1183
    %1545 = vmatmul.bf16.gmra.mxu0 %v649
    %v1546 = vpop.f32.mrf.mxu0
    %v1547 = vadd.f32 %v423, %v1546
    %v1548 = vpop.f32.mrf.mxu0
    %1549 = vdwg.mxu0
    %1550 = vmatpush.bf16.msra.mxu0 %v1258
    %1551 = vmatpush.bf16.msra.mxu0 %v1253
    %1552 = vmatpush.bf16.msra.mxu0 %v1248
    %1553 = vmatpush.bf16.msra.mxu0 %v1243
    %1554 = vmatpush.bf16.msra.mxu0 %v1238
    %1555 = vmatpush.bf16.msra.mxu0 %v1233
    %1556 = vmatpush.bf16.msra.mxu0 %v1228
    %1557 = vmatpush.bf16.msra.mxu0 %v1223
    %1558 = vmatmul.bf16.gmra.mxu0 %v650
    %v1559 = vpop.f32.mrf.mxu0
    %v1560 = vadd.f32 %v1547, %v1559
    %v1561 = vpop.f32.mrf.mxu0
    %1562 = vdwg.mxu0
    %1563 = vmatpush.bf16.msra.mxu0 %v1298
    %1564 = vmatpush.bf16.msra.mxu0 %v1293
    %1565 = vmatpush.bf16.msra.mxu0 %v1288
    %1566 = vmatpush.bf16.msra.mxu0 %v1283
    %1567 = vmatpush.bf16.msra.mxu0 %v1278
    %1568 = vmatpush.bf16.msra.mxu0 %v1273
    %1569 = vmatpush.bf16.msra.mxu0 %v1268
    %1570 = vmatpush.bf16.msra.mxu0 %v1263
    %1571 = vmatmul.bf16.gmra.mxu0 %v651
    %v1572 = vpop.f32.mrf.mxu0
    %v1573 = vadd.f32 %v1560, %v1572
    %v1574 = vpop.f32.mrf.mxu0
    %1575 = vdwg.mxu0
    %1576 = vmatpush.bf16.msra.mxu0 %v1219
    %1577 = vmatpush.bf16.msra.mxu0 %v1214
    %1578 = vmatpush.bf16.msra.mxu0 %v1209
    %1579 = vmatpush.bf16.msra.mxu0 %v1204
    %1580 = vmatpush.bf16.msra.mxu0 %v1199
    %1581 = vmatpush.bf16.msra.mxu0 %v1194
    %1582 = vmatpush.bf16.msra.mxu0 %v1189
    %1583 = vmatpush.bf16.msra.mxu0 %v1184
    %1584 = vmatmul.bf16.gmra.mxu0 %v649
    %v1585 = vpop.f32.mrf.mxu0
    %v1586 = vadd.f32 %v436, %v1585
    %v1587 = vpop.f32.mrf.mxu0
    %1588 = vdwg.mxu0
    %1589 = vmatpush.bf16.msra.mxu0 %v1259
    %1590 = vmatpush.bf16.msra.mxu0 %v1254
    %1591 = vmatpush.bf16.msra.mxu0 %v1249
    %1592 = vmatpush.bf16.msra.mxu0 %v1244
    %1593 = vmatpush.bf16.msra.mxu0 %v1239
    %1594 = vmatpush.bf16.msra.mxu0 %v1234
    %1595 = vmatpush.bf16.msra.mxu0 %v1229
    %1596 = vmatpush.bf16.msra.mxu0 %v1224
    %1597 = vmatmul.bf16.gmra.mxu0 %v650
    %v1598 = vpop.f32.mrf.mxu0
    %v1599 = vadd.f32 %v1586, %v1598
    %v1600 = vpop.f32.mrf.mxu0
    %1601 = vdwg.mxu0
    %1602 = vmatpush.bf16.msra.mxu0 %v1299
    %1603 = vmatpush.bf16.msra.mxu0 %v1294
    %1604 = vmatpush.bf16.msra.mxu0 %v1289
    %1605 = vmatpush.bf16.msra.mxu0 %v1284
    %1606 = vmatpush.bf16.msra.mxu0 %v1279
    %1607 = vmatpush.bf16.msra.mxu0 %v1274
    %1608 = vmatpush.bf16.msra.mxu0 %v1269
    %1609 = vmatpush.bf16.msra.mxu0 %v1264
    %1610 = vmatmul.bf16.gmra.mxu0 %v651
    %v1611 = vpop.f32.mrf.mxu0
    %v1612 = vadd.f32 %v1599, %v1611
    %v1613 = vpop.f32.mrf.mxu0
    %1614 = vdwg.mxu0
    %v1615 = vld [vmem:[%s6] sm:$0x1f]
    %v1617 = vperm.slane %v1615, 0
    %v1618 = vperm.slane %v1615, 1
    %v1619 = vperm.slane %v1615, 2
    %v1620 = vperm.slane %v1615, 3
    %v1621 = vperm.slane %v1615, 4
    %v1627 = vadd.f32 %v1456, %v1617
    %v1628 = vadd.f32 %v1495, %v1618
    %v1629 = vadd.f32 %v1534, %v1619
    %v1630 = vadd.f32 %v1573, %v1620
    %v1631 = vadd.f32 %v1612, %v1621
    %v1632 = vpack.c.bf16 %v1627, %v1627
    %v1633 = vpack.c.bf16 %v1628, %v1628
    %v1634 = vpack.c.bf16 %v1629, %v1629
    %v1635 = vpack.c.bf16 %v1630, %v1630
    %v1636 = vpack.c.bf16 %v1631, %v1631
    %v1637 = vld [vmem:[#allocation7] sm:$0xff]
    %v1638 = vld [vmem:[#allocation7 + $0x8] sm:$0xff]
    %v1639 = vld [vmem:[#allocation7 + $0x10] sm:$0xf]
    %v1640 = vld [vmem:[#allocation7 + $0x14] sm:$0xff]
    %v1641 = vld [vmem:[#allocation7 + $0x1c] sm:$0xff]
    %v1642 = vld [vmem:[#allocation7 + $0x24] sm:$0xf]
    %v1643 = vld [vmem:[#allocation7 + $0x28] sm:$0xff]
    %v1644 = vld [vmem:[#allocation7 + $0x30] sm:$0xff]
    %v1645 = vld [vmem:[#allocation7 + $0x38] sm:$0xf]
    %v1646 = vld [vmem:[#allocation7 + $0x3c] sm:$0xff]
    %v1647 = vld [vmem:[#allocation7 + $0x44] sm:$0xff]
    %v1648 = vld [vmem:[#allocation7 + $0x4c] sm:$0xf]
    %v1649 = vld [vmem:[#allocation7 + $0x50] sm:$0xff]
    %v1650 = vld [vmem:[#allocation7 + $0x58] sm:$0xff]
    %v1651 = vld [vmem:[#allocation7 + $0x60] sm:$0xf]
    %v1652 = vld [vmem:[#allocation7 + $0x64] sm:$0xff]
    %v1653 = vld [vmem:[#allocation7 + $0x6c] sm:$0xff]
    %v1654 = vld [vmem:[#allocation7 + $0x74] sm:$0xf]
    %v1655 = vld [vmem:[#allocation7 + $0x78] sm:$0xff]
    %v1656 = vld [vmem:[#allocation7 + $0x80] sm:$0xff]
    %v1657 = vld [vmem:[#allocation7 + $0x88] sm:$0xf]
    %v1658 = vld [vmem:[#allocation7 + $0x8c] sm:$0xff]
    %v1659 = vld [vmem:[#allocation7 + $0x94] sm:$0xff]
    %v1660 = vld [vmem:[#allocation7 + $0x9c] sm:$0xf]
    %v1661 = vld [vmem:[#allocation7 + $0xa0] sm:$0xff]
    %v1662 = vld [vmem:[#allocation7 + $0xa8] sm:$0xff]
    %v1663 = vld [vmem:[#allocation7 + $0xb0] sm:$0xf]
    %v1664 = vld [vmem:[#allocation7 + $0xb4] sm:$0xff]
    %v1665 = vld [vmem:[#allocation7 + $0xbc] sm:$0xff]
    %v1666 = vld [vmem:[#allocation7 + $0xc4] sm:$0xf]
    %v1667 = vld [vmem:[#allocation7 + $0xc8] sm:$0xff]
    %v1668 = vld [vmem:[#allocation7 + $0xd0] sm:$0xff]
    %v1669 = vld [vmem:[#allocation7 + $0xd8] sm:$0xf]
    %v1670 = vld [vmem:[#allocation7 + $0xdc] sm:$0xff]
    %v1671 = vld [vmem:[#allocation7 + $0xe4] sm:$0xff]
    %v1672 = vld [vmem:[#allocation7 + $0xec] sm:$0xf]
    %v1673 = vld [vmem:[#allocation7 + $0xf0] sm:$0xff]
    %v1674 = vld [vmem:[#allocation7 + $0xf8] sm:$0xff]
    %v1675 = vld [vmem:[#allocation7 + $0x100] sm:$0xf]
    %v1676 = vld [vmem:[#allocation7 + $0x104] sm:$0xff]
    %v1677 = vld [vmem:[#allocation7 + $0x10c] sm:$0xff]
    %v1678 = vld [vmem:[#allocation7 + $0x114] sm:$0xf]
    %v1679 = vld [vmem:[#allocation7 + $0x118] sm:$0xff]
    %v1680 = vld [vmem:[#allocation7 + $0x120] sm:$0xff]
    %v1681 = vld [vmem:[#allocation7 + $0x128] sm:$0xf]
    %v1682 = vld [vmem:[#allocation7 + $0x12c] sm:$0xff]
    %v1683 = vld [vmem:[#allocation7 + $0x134] sm:$0xff]
    %v1684 = vld [vmem:[#allocation7 + $0x13c] sm:$0xf]
    %v1685 = vld [vmem:[#allocation7 + $0x140] sm:$0xff]
    %v1686 = vld [vmem:[#allocation7 + $0x148] sm:$0xff]
    %v1687 = vld [vmem:[#allocation7 + $0x150] sm:$0xf]
    %v1688 = vld [vmem:[#allocation7 + $0x154] sm:$0xff]
    %v1689 = vld [vmem:[#allocation7 + $0x15c] sm:$0xff]
    %v1690 = vld [vmem:[#allocation7 + $0x164] sm:$0xf]
    %v1691 = vld [vmem:[#allocation7 + $0x168] sm:$0xff]
    %v1692 = vld [vmem:[#allocation7 + $0x170] sm:$0xff]
    %v1693 = vld [vmem:[#allocation7 + $0x178] sm:$0xf]
    %v1694 = vld [vmem:[#allocation7 + $0x17c] sm:$0xff]
    %v1695 = vld [vmem:[#allocation7 + $0x184] sm:$0xff]
    %v1696 = vld [vmem:[#allocation7 + $0x18c] sm:$0xf]
    %v1697 = vld [vmem:[#allocation7 + $0x190] sm:$0xff]
    %v1698 = vld [vmem:[#allocation7 + $0x198] sm:$0xff]
    %v1699 = vld [vmem:[#allocation7 + $0x1a0] sm:$0xf]
    %v1700 = vld [vmem:[#allocation7 + $0x1a4] sm:$0xff]
    %v1701 = vld [vmem:[#allocation7 + $0x1ac] sm:$0xff]
    %v1702 = vld [vmem:[#allocation7 + $0x1b4] sm:$0xf]
    %v1703 = vld [vmem:[#allocation7 + $0x1b8] sm:$0xff]
    %v1704 = vld [vmem:[#allocation7 + $0x1c0] sm:$0xff]
    %v1705 = vld [vmem:[#allocation7 + $0x1c8] sm:$0xf]
    %v1706 = vld [vmem:[#allocation7 + $0x1cc] sm:$0xff]
    %v1707 = vld [vmem:[#allocation7 + $0x1d4] sm:$0xff]
    %v1708 = vld [vmem:[#allocation7 + $0x1dc] sm:$0xf]
    %v1709 = vld [vmem:[#allocation7 + $0x1e0] sm:$0xff]
    %v1710 = vld [vmem:[#allocation7 + $0x1e8] sm:$0xff]
    %v1711 = vld [vmem:[#allocation7 + $0x1f0] sm:$0xf]
    %v1712 = vld [vmem:[#allocation7 + $0x1f4] sm:$0xff]
    %v1713 = vld [vmem:[#allocation7 + $0x1fc] sm:$0xff]
    %v1714 = vld [vmem:[#allocation7 + $0x204] sm:$0xf]
    %v1715 = vld [vmem:[#allocation7 + $0x208] sm:$0xff]
    %v1716 = vld [vmem:[#allocation7 + $0x210] sm:$0xff]
    %v1717 = vld [vmem:[#allocation7 + $0x218] sm:$0xf]
    %v1718 = vld [vmem:[#allocation7 + $0x21c] sm:$0xff]
    %v1719 = vld [vmem:[#allocation7 + $0x224] sm:$0xff]
    %v1720 = vld [vmem:[#allocation7 + $0x22c] sm:$0xf]
    %v1721 = vld [vmem:[#allocation7 + $0x230] sm:$0xff]
    %v1722 = vld [vmem:[#allocation7 + $0x238] sm:$0xff]
    %v1723 = vld [vmem:[#allocation7 + $0x240] sm:$0xf]
    %v1724 = vld [vmem:[#allocation7 + $0x244] sm:$0xff]
    %v1725 = vld [vmem:[#allocation7 + $0x24c] sm:$0xff]
    %v1726 = vld [vmem:[#allocation7 + $0x254] sm:$0xf]
    %v1727 = vld [vmem:[#allocation7 + $0x258] sm:$0xff]
    %v1728 = vld [vmem:[#allocation7 + $0x260] sm:$0xff]
    %v1729 = vld [vmem:[#allocation7 + $0x268] sm:$0xf]
    %v1730 = vld [vmem:[#allocation7 + $0x26c] sm:$0xff]
    %v1731 = vld [vmem:[#allocation7 + $0x274] sm:$0xff]
    %v1732 = vld [vmem:[#allocation7 + $0x27c] sm:$0xf]
    %v1733 = vld [vmem:[#allocation7 + $0x280] sm:$0xff]
    %v1734 = vld [vmem:[#allocation7 + $0x288] sm:$0xff]
    %v1735 = vld [vmem:[#allocation7 + $0x290] sm:$0xf]
    %v1736 = vld [vmem:[#allocation7 + $0x294] sm:$0xff]
    %v1737 = vld [vmem:[#allocation7 + $0x29c] sm:$0xff]
    %v1738 = vld [vmem:[#allocation7 + $0x2a4] sm:$0xf]
    %v1739 = vld [vmem:[#allocation7 + $0x2a8] sm:$0xff]
    %v1740 = vld [vmem:[#allocation7 + $0x2b0] sm:$0xff]
    %v1741 = vld [vmem:[#allocation7 + $0x2b8] sm:$0xf]
    %v1742 = vld [vmem:[#allocation7 + $0x2bc] sm:$0xff]
    %v1743 = vld [vmem:[#allocation7 + $0x2c4] sm:$0xff]
    %v1744 = vld [vmem:[#allocation7 + $0x2cc] sm:$0xf]
    %v1745 = vld [vmem:[#allocation7 + $0x2d0] sm:$0xff]
    %v1746 = vld [vmem:[#allocation7 + $0x2d8] sm:$0xff]
    %v1747 = vld [vmem:[#allocation7 + $0x2e0] sm:$0xf]
    %v1748 = vld [vmem:[#allocation7 + $0x2e4] sm:$0xff]
    %v1749 = vld [vmem:[#allocation7 + $0x2ec] sm:$0xff]
    %v1750 = vld [vmem:[#allocation7 + $0x2f4] sm:$0xf]
    %v1751 = vld [vmem:[#allocation7 + $0x2f8] sm:$0xff]
    %v1752 = vld [vmem:[#allocation7 + $0x300] sm:$0xff]
    %v1753 = vld [vmem:[#allocation7 + $0x308] sm:$0xf]
    %v1754 = vld [vmem:[#allocation7 + $0x30c] sm:$0xff]
    %v1755 = vld [vmem:[#allocation7 + $0x314] sm:$0xff]
    %v1756 = vld [vmem:[#allocation7 + $0x31c] sm:$0xf]
    %v1757 = vld [vmem:[#allocation7 + $0x320] sm:$0xff]
    %v1758 = vld [vmem:[#allocation7 + $0x328] sm:$0xff]
    %v1759 = vld [vmem:[#allocation7 + $0x330] sm:$0xf]
    %v1760 = vld [vmem:[#allocation7 + $0x334] sm:$0xff]
    %v1761 = vld [vmem:[#allocation7 + $0x33c] sm:$0xff]
    %v1762 = vld [vmem:[#allocation7 + $0x344] sm:$0xf]
    %v1763 = vld [vmem:[#allocation7 + $0x348] sm:$0xff]
    %v1764 = vld [vmem:[#allocation7 + $0x350] sm:$0xff]
    %v1765 = vld [vmem:[#allocation7 + $0x358] sm:$0xf]
    %v1766 = vld [vmem:[#allocation7 + $0x35c] sm:$0xff]
    %v1767 = vld [vmem:[#allocation7 + $0x364] sm:$0xff]
    %v1768 = vld [vmem:[#allocation7 + $0x36c] sm:$0xf]
    %v1769 = vld [vmem:[#allocation7 + $0x370] sm:$0xff]
    %v1770 = vld [vmem:[#allocation7 + $0x378] sm:$0xff]
    %v1771 = vld [vmem:[#allocation7 + $0x380] sm:$0xf]
    %v1772 = vld [vmem:[#allocation7 + $0x384] sm:$0xff]
    %v1773 = vld [vmem:[#allocation7 + $0x38c] sm:$0xff]
    %v1774 = vld [vmem:[#allocation7 + $0x394] sm:$0xf]
    %v1775 = vld [vmem:[#allocation7 + $0x398] sm:$0xff]
    %v1776 = vld [vmem:[#allocation7 + $0x3a0] sm:$0xff]
    %v1777 = vld [vmem:[#allocation7 + $0x3a8] sm:$0xf]
    %v1778 = vld [vmem:[#allocation7 + $0x3ac] sm:$0xff]
    %v1779 = vld [vmem:[#allocation7 + $0x3b4] sm:$0xff]
    %v1780 = vld [vmem:[#allocation7 + $0x3bc] sm:$0xf]
    %v1781 = vld [vmem:[#allocation7 + $0x3c0] sm:$0xff]
    %v1782 = vld [vmem:[#allocation7 + $0x3c8] sm:$0xff]
    %v1783 = vld [vmem:[#allocation7 + $0x3d0] sm:$0xf]
    %v1784 = vld [vmem:[#allocation7 + $0x3d4] sm:$0xff]
    %v1785 = vld [vmem:[#allocation7 + $0x3dc] sm:$0xff]
    %v1786 = vld [vmem:[#allocation7 + $0x3e4] sm:$0xf]
    %v1787 = vld [vmem:[#allocation7 + $0x3e8] sm:$0xff]
    %v1788 = vld [vmem:[#allocation7 + $0x3f0] sm:$0xff]
    %v1789 = vld [vmem:[#allocation7 + $0x3f8] sm:$0xf]
    %v1790 = vld [vmem:[#allocation7 + $0x3fc] sm:$0xff]
    %v1791 = vld [vmem:[#allocation7 + $0x404] sm:$0xff]
    %v1792 = vld [vmem:[#allocation7 + $0x40c] sm:$0xf]
    %v1793 = vld [vmem:[#allocation7 + $0x410] sm:$0xff]
    %v1794 = vld [vmem:[#allocation7 + $0x418] sm:$0xff]
    %v1795 = vld [vmem:[#allocation7 + $0x420] sm:$0xf]
    %v1796 = vld [vmem:[#allocation7 + $0x424] sm:$0xff]
    %v1797 = vld [vmem:[#allocation7 + $0x42c] sm:$0xff]
    %v1798 = vld [vmem:[#allocation7 + $0x434] sm:$0xf]
    %v1799 = vld [vmem:[#allocation7 + $0x438] sm:$0xff]
    %v1800 = vld [vmem:[#allocation7 + $0x440] sm:$0xff]
    %v1801 = vld [vmem:[#allocation7 + $0x448] sm:$0xf]
    %v1802 = vld [vmem:[#allocation7 + $0x44c] sm:$0xff]
    %v1803 = vld [vmem:[#allocation7 + $0x454] sm:$0xff]
    %v1804 = vld [vmem:[#allocation7 + $0x45c] sm:$0xf]
    %v1805 = vld [vmem:[#allocation7 + $0x460] sm:$0xff]
    %v1806 = vld [vmem:[#allocation7 + $0x468] sm:$0xff]
    %v1807 = vld [vmem:[#allocation7 + $0x470] sm:$0xf]
    %v1808 = vld [vmem:[#allocation7 + $0x474] sm:$0xff]
    %v1809 = vld [vmem:[#allocation7 + $0x47c] sm:$0xff]
    %v1810 = vld [vmem:[#allocation7 + $0x484] sm:$0xf]
    %v1811 = vld [vmem:[#allocation7 + $0x488] sm:$0xff]
    %v1812 = vld [vmem:[#allocation7 + $0x490] sm:$0xff]
    %v1813 = vld [vmem:[#allocation7 + $0x498] sm:$0xf]
    %v1814 = vld [vmem:[#allocation7 + $0x49c] sm:$0xff]
    %v1815 = vld [vmem:[#allocation7 + $0x4a4] sm:$0xff]
    %v1816 = vld [vmem:[#allocation7 + $0x4ac] sm:$0xf]
    %v1817 = vld [vmem:[#allocation7 + $0x4b0] sm:$0xff]
    %v1818 = vld [vmem:[#allocation7 + $0x4b8] sm:$0xff]
    %v1819 = vld [vmem:[#allocation7 + $0x4c0] sm:$0xf]
    %v1820 = vld [vmem:[#allocation7 + $0x4c4] sm:$0xff]
    %v1821 = vld [vmem:[#allocation7 + $0x4cc] sm:$0xff]
    %v1822 = vld [vmem:[#allocation7 + $0x4d4] sm:$0xf]
    %v1823 = vld [vmem:[#allocation7 + $0x4d8] sm:$0xff]
    %v1824 = vld [vmem:[#allocation7 + $0x4e0] sm:$0xff]
    %v1825 = vld [vmem:[#allocation7 + $0x4e8] sm:$0xf]
    %v1826 = vld [vmem:[#allocation7 + $0x4ec] sm:$0xff]
    %v1827 = vld [vmem:[#allocation7 + $0x4f4] sm:$0xff]
    %v1828 = vld [vmem:[#allocation7 + $0x4fc] sm:$0xf]
    %v1829 = vld [vmem:[#allocation7 + $0x500] sm:$0xff]
    %v1830 = vld [vmem:[#allocation7 + $0x508] sm:$0xff]
    %v1831 = vld [vmem:[#allocation7 + $0x510] sm:$0xf]
    %v1832 = vld [vmem:[#allocation7 + $0x514] sm:$0xff]
    %v1833 = vld [vmem:[#allocation7 + $0x51c] sm:$0xff]
    %v1834 = vld [vmem:[#allocation7 + $0x524] sm:$0xf]
    %v1835 = vld [vmem:[#allocation7 + $0x528] sm:$0xff]
    %v1836 = vld [vmem:[#allocation7 + $0x530] sm:$0xff]
    %v1837 = vld [vmem:[#allocation7 + $0x538] sm:$0xf]
    %v1838 = vld [vmem:[#allocation7 + $0x53c] sm:$0xff]
    %v1839 = vld [vmem:[#allocation7 + $0x544] sm:$0xff]
    %v1840 = vld [vmem:[#allocation7 + $0x54c] sm:$0xf]
    %v1841 = vld [vmem:[#allocation7 + $0x550] sm:$0xff]
    %v1842 = vld [vmem:[#allocation7 + $0x558] sm:$0xff]
    %v1843 = vld [vmem:[#allocation7 + $0x560] sm:$0xf]
    %v1844 = vld [vmem:[#allocation7 + $0x564] sm:$0xff]
    %v1845 = vld [vmem:[#allocation7 + $0x56c] sm:$0xff]
    %v1846 = vld [vmem:[#allocation7 + $0x574] sm:$0xf]
    %v1847 = vld [vmem:[#allocation7 + $0x578] sm:$0xff]
    %v1848 = vld [vmem:[#allocation7 + $0x580] sm:$0xff]
    %v1849 = vld [vmem:[#allocation7 + $0x588] sm:$0xf]
    %v1850 = vld [vmem:[#allocation7 + $0x58c] sm:$0xff]
    %v1851 = vld [vmem:[#allocation7 + $0x594] sm:$0xff]
    %v1852 = vld [vmem:[#allocation7 + $0x59c] sm:$0xf]
    %v1853 = vld [vmem:[#allocation7 + $0x5a0] sm:$0xff]
    %v1854 = vld [vmem:[#allocation7 + $0x5a8] sm:$0xff]
    %v1855 = vld [vmem:[#allocation7 + $0x5b0] sm:$0xf]
    %v1856 = vld [vmem:[#allocation7 + $0x5b4] sm:$0xff]
    %v1857 = vld [vmem:[#allocation7 + $0x5bc] sm:$0xff]
    %v1858 = vld [vmem:[#allocation7 + $0x5c4] sm:$0xf]
    %v1859 = vld [vmem:[#allocation7 + $0x5c8] sm:$0xff]
    %v1860 = vld [vmem:[#allocation7 + $0x5d0] sm:$0xff]
    %v1861 = vld [vmem:[#allocation7 + $0x5d8] sm:$0xf]
    %v1862 = vld [vmem:[#allocation7 + $0x5dc] sm:$0xff]
    %v1863 = vld [vmem:[#allocation7 + $0x5e4] sm:$0xff]
    %v1864 = vld [vmem:[#allocation7 + $0x5ec] sm:$0xf]
    %v1865 = vld [vmem:[#allocation7 + $0x5f0] sm:$0xff]
    %v1866 = vld [vmem:[#allocation7 + $0x5f8] sm:$0xff]
    %v1867 = vld [vmem:[#allocation7 + $0x600] sm:$0xf]
    %v1868 = vld [vmem:[#allocation7 + $0x604] sm:$0xff]
    %v1869 = vld [vmem:[#allocation7 + $0x60c] sm:$0xff]
    %v1870 = vld [vmem:[#allocation7 + $0x614] sm:$0xf]
    %v1871 = vld [vmem:[#allocation7 + $0x618] sm:$0xff]
    %v1872 = vld [vmem:[#allocation7 + $0x620] sm:$0xff]
    %v1873 = vld [vmem:[#allocation7 + $0x628] sm:$0xf]
    %v1874 = vld [vmem:[#allocation7 + $0x62c] sm:$0xff]
    %v1875 = vld [vmem:[#allocation7 + $0x634] sm:$0xff]
    %v1876 = vld [vmem:[#allocation7 + $0x63c] sm:$0xf]
    %v1877 = vld [vmem:[%s8] sm:$0x1f]
    %v1879 = vperm.slane %v1877, 0
    %v1880 = vperm.slane %v1877, 1
    %v1881 = vperm.slane %v1877, 2
    %v1882 = vperm.slane %v1877, 3
    %v1883 = vperm.slane %v1877, 4
    %v2129 = vunpack.c.l.b16 %v1637
    %v2130 = vunpack.c.h.b16 %v1637
    %v2131 = vunpack.c.l.b16 %v1638
    %v2132 = vunpack.c.h.b16 %v1638
    %v2133 = vunpack.c.l.b16 %v1639
    %v2134 = vunpack.c.l.b16 %v1640
    %v2135 = vunpack.c.h.b16 %v1640
    %v2136 = vunpack.c.l.b16 %v1641
    %v2137 = vunpack.c.h.b16 %v1641
    %v2138 = vunpack.c.l.b16 %v1642
    %v2139 = vunpack.c.l.b16 %v1643
    %v2140 = vunpack.c.h.b16 %v1643
    %v2141 = vunpack.c.l.b16 %v1644
    %v2142 = vunpack.c.h.b16 %v1644
    %v2143 = vunpack.c.l.b16 %v1645
    %v2144 = vunpack.c.l.b16 %v1646
    %v2145 = vunpack.c.h.b16 %v1646
    %v2146 = vunpack.c.l.b16 %v1647
    %v2147 = vunpack.c.h.b16 %v1647
    %v2148 = vunpack.c.l.b16 %v1648
    %v2149 = vunpack.c.l.b16 %v1649
    %v2150 = vunpack.c.h.b16 %v1649
    %v2151 = vunpack.c.l.b16 %v1650
    %v2152 = vunpack.c.h.b16 %v1650
    %v2153 = vunpack.c.l.b16 %v1651
    %v2154 = vunpack.c.l.b16 %v1652
    %v2155 = vunpack.c.h.b16 %v1652
    %v2156 = vunpack.c.l.b16 %v1653
    %v2157 = vunpack.c.h.b16 %v1653
    %v2158 = vunpack.c.l.b16 %v1654
    %v2159 = vunpack.c.l.b16 %v1655
    %v2160 = vunpack.c.h.b16 %v1655
    %v2161 = vunpack.c.l.b16 %v1656
    %v2162 = vunpack.c.h.b16 %v1656
    %v2163 = vunpack.c.l.b16 %v1657
    %v2164 = vunpack.c.l.b16 %v1658
    %v2165 = vunpack.c.h.b16 %v1658
    %v2166 = vunpack.c.l.b16 %v1659
    %v2167 = vunpack.c.h.b16 %v1659
    %v2168 = vunpack.c.l.b16 %v1660
    %v2169 = vunpack.c.l.b16 %v1661
    %v2170 = vunpack.c.h.b16 %v1661
    %v2171 = vunpack.c.l.b16 %v1662
    %v2172 = vunpack.c.h.b16 %v1662
    %v2173 = vunpack.c.l.b16 %v1663
    %v2174 = vunpack.c.l.b16 %v1664
    %v2175 = vunpack.c.h.b16 %v1664
    %v2176 = vunpack.c.l.b16 %v1665
    %v2177 = vunpack.c.h.b16 %v1665
    %v2178 = vunpack.c.l.b16 %v1666
    %v2179 = vunpack.c.l.b16 %v1667
    %v2180 = vunpack.c.h.b16 %v1667
    %v2181 = vunpack.c.l.b16 %v1668
    %v2182 = vunpack.c.h.b16 %v1668
    %v2183 = vunpack.c.l.b16 %v1669
    %v2184 = vunpack.c.l.b16 %v1670
    %v2185 = vunpack.c.h.b16 %v1670
    %v2186 = vunpack.c.l.b16 %v1671
    %v2187 = vunpack.c.h.b16 %v1671
    %v2188 = vunpack.c.l.b16 %v1672
    %v2189 = vunpack.c.l.b16 %v1673
    %v2190 = vunpack.c.h.b16 %v1673
    %v2191 = vunpack.c.l.b16 %v1674
    %v2192 = vunpack.c.h.b16 %v1674
    %v2193 = vunpack.c.l.b16 %v1675
    %v2194 = vunpack.c.l.b16 %v1676
    %v2195 = vunpack.c.h.b16 %v1676
    %v2196 = vunpack.c.l.b16 %v1677
    %v2197 = vunpack.c.h.b16 %v1677
    %v2198 = vunpack.c.l.b16 %v1678
    %v2199 = vunpack.c.l.b16 %v1679
    %v2200 = vunpack.c.h.b16 %v1679
    %v2201 = vunpack.c.l.b16 %v1680
    %v2202 = vunpack.c.h.b16 %v1680
    %v2203 = vunpack.c.l.b16 %v1681
    %v2204 = vunpack.c.l.b16 %v1682
    %v2205 = vunpack.c.h.b16 %v1682
    %v2206 = vunpack.c.l.b16 %v1683
    %v2207 = vunpack.c.h.b16 %v1683
    %v2208 = vunpack.c.l.b16 %v1684
    %v2209 = vunpack.c.l.b16 %v1685
    %v2210 = vunpack.c.h.b16 %v1685
    %v2211 = vunpack.c.l.b16 %v1686
    %v2212 = vunpack.c.h.b16 %v1686
    %v2213 = vunpack.c.l.b16 %v1687
    %v2214 = vunpack.c.l.b16 %v1688
    %v2215 = vunpack.c.h.b16 %v1688
    %v2216 = vunpack.c.l.b16 %v1689
    %v2217 = vunpack.c.h.b16 %v1689
    %v2218 = vunpack.c.l.b16 %v1690
    %v2219 = vunpack.c.l.b16 %v1691
    %v2220 = vunpack.c.h.b16 %v1691
    %v2221 = vunpack.c.l.b16 %v1692
    %v2222 = vunpack.c.h.b16 %v1692
    %v2223 = vunpack.c.l.b16 %v1693
    %v2224 = vunpack.c.l.b16 %v1694
    %v2225 = vunpack.c.h.b16 %v1694
    %v2226 = vunpack.c.l.b16 %v1695
    %v2227 = vunpack.c.h.b16 %v1695
    %v2228 = vunpack.c.l.b16 %v1696
    %v2229 = vunpack.c.l.b16 %v1697
    %v2230 = vunpack.c.h.b16 %v1697
    %v2231 = vunpack.c.l.b16 %v1698
    %v2232 = vunpack.c.h.b16 %v1698
    %v2233 = vunpack.c.l.b16 %v1699
    %v2234 = vunpack.c.l.b16 %v1700
    %v2235 = vunpack.c.h.b16 %v1700
    %v2236 = vunpack.c.l.b16 %v1701
    %v2237 = vunpack.c.h.b16 %v1701
    %v2238 = vunpack.c.l.b16 %v1702
    %v2239 = vunpack.c.l.b16 %v1703
    %v2240 = vunpack.c.h.b16 %v1703
    %v2241 = vunpack.c.l.b16 %v1704
    %v2242 = vunpack.c.h.b16 %v1704
    %v2243 = vunpack.c.l.b16 %v1705
    %v2244 = vunpack.c.l.b16 %v1706
    %v2245 = vunpack.c.h.b16 %v1706
    %v2246 = vunpack.c.l.b16 %v1707
    %v2247 = vunpack.c.h.b16 %v1707
    %v2248 = vunpack.c.l.b16 %v1708
    %v2249 = vunpack.c.l.b16 %v1709
    %v2250 = vunpack.c.h.b16 %v1709
    %v2251 = vunpack.c.l.b16 %v1710
    %v2252 = vunpack.c.h.b16 %v1710
    %v2253 = vunpack.c.l.b16 %v1711
    %v2254 = vunpack.c.l.b16 %v1712
    %v2255 = vunpack.c.h.b16 %v1712
    %v2256 = vunpack.c.l.b16 %v1713
    %v2257 = vunpack.c.h.b16 %v1713
    %v2258 = vunpack.c.l.b16 %v1714
    %v2259 = vunpack.c.l.b16 %v1715
    %v2260 = vunpack.c.h.b16 %v1715
    %v2261 = vunpack.c.l.b16 %v1716
    %v2262 = vunpack.c.h.b16 %v1716
    %v2263 = vunpack.c.l.b16 %v1717
    %v2264 = vunpack.c.l.b16 %v1718
    %v2265 = vunpack.c.h.b16 %v1718
    %v2266 = vunpack.c.l.b16 %v1719
    %v2267 = vunpack.c.h.b16 %v1719
    %v2268 = vunpack.c.l.b16 %v1720
    %v2269 = vunpack.c.l.b16 %v1721
    %v2270 = vunpack.c.h.b16 %v1721
    %v2271 = vunpack.c.l.b16 %v1722
    %v2272 = vunpack.c.h.b16 %v1722
    %v2273 = vunpack.c.l.b16 %v1723
    %v2274 = vunpack.c.l.b16 %v1724
    %v2275 = vunpack.c.h.b16 %v1724
    %v2276 = vunpack.c.l.b16 %v1725
    %v2277 = vunpack.c.h.b16 %v1725
    %v2278 = vunpack.c.l.b16 %v1726
    %v2279 = vunpack.c.l.b16 %v1727
    %v2280 = vunpack.c.h.b16 %v1727
    %v2281 = vunpack.c.l.b16 %v1728
    %v2282 = vunpack.c.h.b16 %v1728
    %v2283 = vunpack.c.l.b16 %v1729
    %v2284 = vunpack.c.l.b16 %v1730
    %v2285 = vunpack.c.h.b16 %v1730
    %v2286 = vunpack.c.l.b16 %v1731
    %v2287 = vunpack.c.h.b16 %v1731
    %v2288 = vunpack.c.l.b16 %v1732
    %v2289 = vunpack.c.l.b16 %v1733
    %v2290 = vunpack.c.h.b16 %v1733
    %v2291 = vunpack.c.l.b16 %v1734
    %v2292 = vunpack.c.h.b16 %v1734
    %v2293 = vunpack.c.l.b16 %v1735
    %v2294 = vunpack.c.l.b16 %v1736
    %v2295 = vunpack.c.h.b16 %v1736
    %v2296 = vunpack.c.l.b16 %v1737
    %v2297 = vunpack.c.h.b16 %v1737
    %v2298 = vunpack.c.l.b16 %v1738
    %v2299 = vunpack.c.l.b16 %v1739
    %v2300 = vunpack.c.h.b16 %v1739
    %v2301 = vunpack.c.l.b16 %v1740
    %v2302 = vunpack.c.h.b16 %v1740
    %v2303 = vunpack.c.l.b16 %v1741
    %v2304 = vunpack.c.l.b16 %v1742
    %v2305 = vunpack.c.h.b16 %v1742
    %v2306 = vunpack.c.l.b16 %v1743
    %v2307 = vunpack.c.h.b16 %v1743
    %v2308 = vunpack.c.l.b16 %v1744
    %v2309 = vunpack.c.l.b16 %v1745
    %v2310 = vunpack.c.h.b16 %v1745
    %v2311 = vunpack.c.l.b16 %v1746
    %v2312 = vunpack.c.h.b16 %v1746
    %v2313 = vunpack.c.l.b16 %v1747
    %v2314 = vunpack.c.l.b16 %v1748
    %v2315 = vunpack.c.h.b16 %v1748
    %v2316 = vunpack.c.l.b16 %v1749
    %v2317 = vunpack.c.h.b16 %v1749
    %v2318 = vunpack.c.l.b16 %v1750
    %v2319 = vunpack.c.l.b16 %v1751
    %v2320 = vunpack.c.h.b16 %v1751
    %v2321 = vunpack.c.l.b16 %v1752
    %v2322 = vunpack.c.h.b16 %v1752
    %v2323 = vunpack.c.l.b16 %v1753
    %v2324 = vunpack.c.l.b16 %v1754
    %v2325 = vunpack.c.h.b16 %v1754
    %v2326 = vunpack.c.l.b16 %v1755
    %v2327 = vunpack.c.h.b16 %v1755
    %v2328 = vunpack.c.l.b16 %v1756
    %v2329 = vunpack.c.l.b16 %v1757
    %v2330 = vunpack.c.h.b16 %v1757
    %v2331 = vunpack.c.l.b16 %v1758
    %v2332 = vunpack.c.h.b16 %v1758
    %v2333 = vunpack.c.l.b16 %v1759
    %v2334 = vunpack.c.l.b16 %v1760
    %v2335 = vunpack.c.h.b16 %v1760
    %v2336 = vunpack.c.l.b16 %v1761
    %v2337 = vunpack.c.h.b16 %v1761
    %v2338 = vunpack.c.l.b16 %v1762
    %v2339 = vunpack.c.l.b16 %v1763
    %v2340 = vunpack.c.h.b16 %v1763
    %v2341 = vunpack.c.l.b16 %v1764
    %v2342 = vunpack.c.h.b16 %v1764
    %v2343 = vunpack.c.l.b16 %v1765
    %v2344 = vunpack.c.l.b16 %v1766
    %v2345 = vunpack.c.h.b16 %v1766
    %v2346 = vunpack.c.l.b16 %v1767
    %v2347 = vunpack.c.h.b16 %v1767
    %v2348 = vunpack.c.l.b16 %v1768
    %v2349 = vunpack.c.l.b16 %v1769
    %v2350 = vunpack.c.h.b16 %v1769
    %v2351 = vunpack.c.l.b16 %v1770
    %v2352 = vunpack.c.h.b16 %v1770
    %v2353 = vunpack.c.l.b16 %v1771
    %v2354 = vunpack.c.l.b16 %v1772
    %v2355 = vunpack.c.h.b16 %v1772
    %v2356 = vunpack.c.l.b16 %v1773
    %v2357 = vunpack.c.h.b16 %v1773
    %v2358 = vunpack.c.l.b16 %v1774
    %v2359 = vunpack.c.l.b16 %v1775
    %v2360 = vunpack.c.h.b16 %v1775
    %v2361 = vunpack.c.l.b16 %v1776
    %v2362 = vunpack.c.h.b16 %v1776
    %v2363 = vunpack.c.l.b16 %v1777
    %v2364 = vunpack.c.l.b16 %v1778
    %v2365 = vunpack.c.h.b16 %v1778
    %v2366 = vunpack.c.l.b16 %v1779
    %v2367 = vunpack.c.h.b16 %v1779
    %v2368 = vunpack.c.l.b16 %v1780
    %v2369 = vunpack.c.l.b16 %v1781
    %v2370 = vunpack.c.h.b16 %v1781
    %v2371 = vunpack.c.l.b16 %v1782
    %v2372 = vunpack.c.h.b16 %v1782
    %v2373 = vunpack.c.l.b16 %v1783
    %v2374 = vunpack.c.l.b16 %v1784
    %v2375 = vunpack.c.h.b16 %v1784
    %v2376 = vunpack.c.l.b16 %v1785
    %v2377 = vunpack.c.h.b16 %v1785
    %v2378 = vunpack.c.l.b16 %v1786
    %v2379 = vunpack.c.l.b16 %v1787
    %v2380 = vunpack.c.h.b16 %v1787
    %v2381 = vunpack.c.l.b16 %v1788
    %v2382 = vunpack.c.h.b16 %v1788
    %v2383 = vunpack.c.l.b16 %v1789
    %v2384 = vunpack.c.l.b16 %v1790
    %v2385 = vunpack.c.h.b16 %v1790
    %v2386 = vunpack.c.l.b16 %v1791
    %v2387 = vunpack.c.h.b16 %v1791
    %v2388 = vunpack.c.l.b16 %v1792
    %v2389 = vunpack.c.l.b16 %v1793
    %v2390 = vunpack.c.h.b16 %v1793
    %v2391 = vunpack.c.l.b16 %v1794
    %v2392 = vunpack.c.h.b16 %v1794
    %v2393 = vunpack.c.l.b16 %v1795
    %v2394 = vunpack.c.l.b16 %v1796
    %v2395 = vunpack.c.h.b16 %v1796
    %v2396 = vunpack.c.l.b16 %v1797
    %v2397 = vunpack.c.h.b16 %v1797
    %v2398 = vunpack.c.l.b16 %v1798
    %v2399 = vunpack.c.l.b16 %v1799
    %v2400 = vunpack.c.h.b16 %v1799
    %v2401 = vunpack.c.l.b16 %v1800
    %v2402 = vunpack.c.h.b16 %v1800
    %v2403 = vunpack.c.l.b16 %v1801
    %v2404 = vunpack.c.l.b16 %v1802
    %v2405 = vunpack.c.h.b16 %v1802
    %v2406 = vunpack.c.l.b16 %v1803
    %v2407 = vunpack.c.h.b16 %v1803
    %v2408 = vunpack.c.l.b16 %v1804
    %v2409 = vunpack.c.l.b16 %v1805
    %v2410 = vunpack.c.h.b16 %v1805
    %v2411 = vunpack.c.l.b16 %v1806
    %v2412 = vunpack.c.h.b16 %v1806
    %v2413 = vunpack.c.l.b16 %v1807
    %v2414 = vunpack.c.l.b16 %v1808
    %v2415 = vunpack.c.h.b16 %v1808
    %v2416 = vunpack.c.l.b16 %v1809
    %v2417 = vunpack.c.h.b16 %v1809
    %v2418 = vunpack.c.l.b16 %v1810
    %v2419 = vunpack.c.l.b16 %v1811
    %v2420 = vunpack.c.h.b16 %v1811
    %v2421 = vunpack.c.l.b16 %v1812
    %v2422 = vunpack.c.h.b16 %v1812
    %v2423 = vunpack.c.l.b16 %v1813
    %v2424 = vunpack.c.l.b16 %v1814
    %v2425 = vunpack.c.h.b16 %v1814
    %v2426 = vunpack.c.l.b16 %v1815
    %v2427 = vunpack.c.h.b16 %v1815
    %v2428 = vunpack.c.l.b16 %v1816
    %v2429 = vunpack.c.l.b16 %v1817
    %v2430 = vunpack.c.h.b16 %v1817
    %v2431 = vunpack.c.l.b16 %v1818
    %v2432 = vunpack.c.h.b16 %v1818
    %v2433 = vunpack.c.l.b16 %v1819
    %v2434 = vunpack.c.l.b16 %v1820
    %v2435 = vunpack.c.h.b16 %v1820
    %v2436 = vunpack.c.l.b16 %v1821
    %v2437 = vunpack.c.h.b16 %v1821
    %v2438 = vunpack.c.l.b16 %v1822
    %v2439 = vunpack.c.l.b16 %v1823
    %v2440 = vunpack.c.h.b16 %v1823
    %v2441 = vunpack.c.l.b16 %v1824
    %v2442 = vunpack.c.h.b16 %v1824
    %v2443 = vunpack.c.l.b16 %v1825
    %v2444 = vunpack.c.l.b16 %v1826
    %v2445 = vunpack.c.h.b16 %v1826
    %v2446 = vunpack.c.l.b16 %v1827
    %v2447 = vunpack.c.h.b16 %v1827
    %v2448 = vunpack.c.l.b16 %v1828
    %v2449 = vunpack.c.l.b16 %v1829
    %v2450 = vunpack.c.h.b16 %v1829
    %v2451 = vunpack.c.l.b16 %v1830
    %v2452 = vunpack.c.h.b16 %v1830
    %v2453 = vunpack.c.l.b16 %v1831
    %v2454 = vunpack.c.l.b16 %v1832
    %v2455 = vunpack.c.h.b16 %v1832
    %v2456 = vunpack.c.l.b16 %v1833
    %v2457 = vunpack.c.h.b16 %v1833
    %v2458 = vunpack.c.l.b16 %v1834
    %v2459 = vunpack.c.l.b16 %v1835
    %v2460 = vunpack.c.h.b16 %v1835
    %v2461 = vunpack.c.l.b16 %v1836
    %v2462 = vunpack.c.h.b16 %v1836
    %v2463 = vunpack.c.l.b16 %v1837
    %v2464 = vunpack.c.l.b16 %v1838
    %v2465 = vunpack.c.h.b16 %v1838
    %v2466 = vunpack.c.l.b16 %v1839
    %v2467 = vunpack.c.h.b16 %v1839
    %v2468 = vunpack.c.l.b16 %v1840
    %v2469 = vunpack.c.l.b16 %v1841
    %v2470 = vunpack.c.h.b16 %v1841
    %v2471 = vunpack.c.l.b16 %v1842
    %v2472 = vunpack.c.h.b16 %v1842
    %v2473 = vunpack.c.l.b16 %v1843
    %v2474 = vunpack.c.l.b16 %v1844
    %v2475 = vunpack.c.h.b16 %v1844
    %v2476 = vunpack.c.l.b16 %v1845
    %v2477 = vunpack.c.h.b16 %v1845
    %v2478 = vunpack.c.l.b16 %v1846
    %v2479 = vunpack.c.l.b16 %v1847
    %v2480 = vunpack.c.h.b16 %v1847
    %v2481 = vunpack.c.l.b16 %v1848
    %v2482 = vunpack.c.h.b16 %v1848
    %v2483 = vunpack.c.l.b16 %v1849
    %v2484 = vunpack.c.l.b16 %v1850
    %v2485 = vunpack.c.h.b16 %v1850
    %v2486 = vunpack.c.l.b16 %v1851
    %v2487 = vunpack.c.h.b16 %v1851
    %v2488 = vunpack.c.l.b16 %v1852
    %v2489 = vunpack.c.l.b16 %v1853
    %v2490 = vunpack.c.h.b16 %v1853
    %v2491 = vunpack.c.l.b16 %v1854
    %v2492 = vunpack.c.h.b16 %v1854
    %v2493 = vunpack.c.l.b16 %v1855
    %v2494 = vunpack.c.l.b16 %v1856
    %v2495 = vunpack.c.h.b16 %v1856
    %v2496 = vunpack.c.l.b16 %v1857
    %v2497 = vunpack.c.h.b16 %v1857
    %v2498 = vunpack.c.l.b16 %v1858
    %v2499 = vunpack.c.l.b16 %v1859
    %v2500 = vunpack.c.h.b16 %v1859
    %v2501 = vunpack.c.l.b16 %v1860
    %v2502 = vunpack.c.h.b16 %v1860
    %v2503 = vunpack.c.l.b16 %v1861
    %v2504 = vunpack.c.l.b16 %v1862
    %v2505 = vunpack.c.h.b16 %v1862
    %v2506 = vunpack.c.l.b16 %v1863
    %v2507 = vunpack.c.h.b16 %v1863
    %v2508 = vunpack.c.l.b16 %v1864
    %v2509 = vunpack.c.l.b16 %v1865
    %v2510 = vunpack.c.h.b16 %v1865
    %v2511 = vunpack.c.l.b16 %v1866
    %v2512 = vunpack.c.h.b16 %v1866
    %v2513 = vunpack.c.l.b16 %v1867
    %v2514 = vunpack.c.l.b16 %v1868
    %v2515 = vunpack.c.h.b16 %v1868
    %v2516 = vunpack.c.l.b16 %v1869
    %v2517 = vunpack.c.h.b16 %v1869
    %v2518 = vunpack.c.l.b16 %v1870
    %v2519 = vunpack.c.l.b16 %v1871
    %v2520 = vunpack.c.h.b16 %v1871
    %v2521 = vunpack.c.l.b16 %v1872
    %v2522 = vunpack.c.h.b16 %v1872
    %v2523 = vunpack.c.l.b16 %v1873
    %v2524 = vunpack.c.l.b16 %v1874
    %v2525 = vunpack.c.h.b16 %v1874
    %v2526 = vunpack.c.l.b16 %v1875
    %v2527 = vunpack.c.h.b16 %v1875
    %v2528 = vunpack.c.l.b16 %v1876
    %v2529 = vpack.c.b16 %v2134, %v2129
    %v2530 = vpack.c.b16 %v2135, %v2130
    %v2531 = vpack.c.b16 %v2136, %v2131
    %v2532 = vpack.c.b16 %v2137, %v2132
    %v2533 = vpack.c.b16 %v2138, %v2133
    %v2534 = vpack.c.b16 %v2144, %v2139
    %v2535 = vpack.c.b16 %v2145, %v2140
    %v2536 = vpack.c.b16 %v2146, %v2141
    %v2537 = vpack.c.b16 %v2147, %v2142
    %v2538 = vpack.c.b16 %v2148, %v2143
    %v2539 = vpack.c.b16 %v2154, %v2149
    %v2540 = vpack.c.b16 %v2155, %v2150
    %v2541 = vpack.c.b16 %v2156, %v2151
    %v2542 = vpack.c.b16 %v2157, %v2152
    %v2543 = vpack.c.b16 %v2158, %v2153
    %v2544 = vpack.c.b16 %v2164, %v2159
    %v2545 = vpack.c.b16 %v2165, %v2160
    %v2546 = vpack.c.b16 %v2166, %v2161
    %v2547 = vpack.c.b16 %v2167, %v2162
    %v2548 = vpack.c.b16 %v2168, %v2163
    %v2549 = vpack.c.b16 %v2174, %v2169
    %v2550 = vpack.c.b16 %v2175, %v2170
    %v2551 = vpack.c.b16 %v2176, %v2171
    %v2552 = vpack.c.b16 %v2177, %v2172
    %v2553 = vpack.c.b16 %v2178, %v2173
    %v2554 = vpack.c.b16 %v2184, %v2179
    %v2555 = vpack.c.b16 %v2185, %v2180
    %v2556 = vpack.c.b16 %v2186, %v2181
    %v2557 = vpack.c.b16 %v2187, %v2182
    %v2558 = vpack.c.b16 %v2188, %v2183
    %v2559 = vpack.c.b16 %v2194, %v2189
    %v2560 = vpack.c.b16 %v2195, %v2190
    %v2561 = vpack.c.b16 %v2196, %v2191
    %v2562 = vpack.c.b16 %v2197, %v2192
    %v2563 = vpack.c.b16 %v2198, %v2193
    %v2564 = vpack.c.b16 %v2204, %v2199
    %v2565 = vpack.c.b16 %v2205, %v2200
    %v2566 = vpack.c.b16 %v2206, %v2201
    %v2567 = vpack.c.b16 %v2207, %v2202
    %v2568 = vpack.c.b16 %v2208, %v2203
    %v2569 = vpack.c.b16 %v2214, %v2209
    %v2570 = vpack.c.b16 %v2215, %v2210
    %v2571 = vpack.c.b16 %v2216, %v2211
    %v2572 = vpack.c.b16 %v2217, %v2212
    %v2573 = vpack.c.b16 %v2218, %v2213
    %v2574 = vpack.c.b16 %v2224, %v2219
    %v2575 = vpack.c.b16 %v2225, %v2220
    %v2576 = vpack.c.b16 %v2226, %v2221
    %v2577 = vpack.c.b16 %v2227, %v2222
    %v2578 = vpack.c.b16 %v2228, %v2223
    %v2579 = vpack.c.b16 %v2234, %v2229
    %v2580 = vpack.c.b16 %v2235, %v2230
    %v2581 = vpack.c.b16 %v2236, %v2231
    %v2582 = vpack.c.b16 %v2237, %v2232
    %v2583 = vpack.c.b16 %v2238, %v2233
    %v2584 = vpack.c.b16 %v2244, %v2239
    %v2585 = vpack.c.b16 %v2245, %v2240
    %v2586 = vpack.c.b16 %v2246, %v2241
    %v2587 = vpack.c.b16 %v2247, %v2242
    %v2588 = vpack.c.b16 %v2248, %v2243
    %v2589 = vpack.c.b16 %v2254, %v2249
    %v2590 = vpack.c.b16 %v2255, %v2250
    %v2591 = vpack.c.b16 %v2256, %v2251
    %v2592 = vpack.c.b16 %v2257, %v2252
    %v2593 = vpack.c.b16 %v2258, %v2253
    %v2594 = vpack.c.b16 %v2264, %v2259
    %v2595 = vpack.c.b16 %v2265, %v2260
    %v2596 = vpack.c.b16 %v2266, %v2261
    %v2597 = vpack.c.b16 %v2267, %v2262
    %v2598 = vpack.c.b16 %v2268, %v2263
    %v2599 = vpack.c.b16 %v2274, %v2269
    %v2600 = vpack.c.b16 %v2275, %v2270
    %v2601 = vpack.c.b16 %v2276, %v2271
    %v2602 = vpack.c.b16 %v2277, %v2272
    %v2603 = vpack.c.b16 %v2278, %v2273
    %v2604 = vpack.c.b16 %v2284, %v2279
    %v2605 = vpack.c.b16 %v2285, %v2280
    %v2606 = vpack.c.b16 %v2286, %v2281
    %v2607 = vpack.c.b16 %v2287, %v2282
    %v2608 = vpack.c.b16 %v2288, %v2283
    %v2609 = vpack.c.b16 %v2294, %v2289
    %v2610 = vpack.c.b16 %v2295, %v2290
    %v2611 = vpack.c.b16 %v2296, %v2291
    %v2612 = vpack.c.b16 %v2297, %v2292
    %v2613 = vpack.c.b16 %v2298, %v2293
    %v2614 = vpack.c.b16 %v2304, %v2299
    %v2615 = vpack.c.b16 %v2305, %v2300
    %v2616 = vpack.c.b16 %v2306, %v2301
    %v2617 = vpack.c.b16 %v2307, %v2302
    %v2618 = vpack.c.b16 %v2308, %v2303
    %v2619 = vpack.c.b16 %v2314, %v2309
    %v2620 = vpack.c.b16 %v2315, %v2310
    %v2621 = vpack.c.b16 %v2316, %v2311
    %v2622 = vpack.c.b16 %v2317, %v2312
    %v2623 = vpack.c.b16 %v2318, %v2313
    %v2624 = vpack.c.b16 %v2324, %v2319
    %v2625 = vpack.c.b16 %v2325, %v2320
    %v2626 = vpack.c.b16 %v2326, %v2321
    %v2627 = vpack.c.b16 %v2327, %v2322
    %v2628 = vpack.c.b16 %v2328, %v2323
    %v2629 = vpack.c.b16 %v2334, %v2329
    %v2630 = vpack.c.b16 %v2335, %v2330
    %v2631 = vpack.c.b16 %v2336, %v2331
    %v2632 = vpack.c.b16 %v2337, %v2332
    %v2633 = vpack.c.b16 %v2338, %v2333
    %v2634 = vpack.c.b16 %v2344, %v2339
    %v2635 = vpack.c.b16 %v2345, %v2340
    %v2636 = vpack.c.b16 %v2346, %v2341
    %v2637 = vpack.c.b16 %v2347, %v2342
    %v2638 = vpack.c.b16 %v2348, %v2343
    %v2639 = vpack.c.b16 %v2354, %v2349
    %v2640 = vpack.c.b16 %v2355, %v2350
    %v2641 = vpack.c.b16 %v2356, %v2351
    %v2642 = vpack.c.b16 %v2357, %v2352
    %v2643 = vpack.c.b16 %v2358, %v2353
    %v2644 = vpack.c.b16 %v2364, %v2359
    %v2645 = vpack.c.b16 %v2365, %v2360
    %v2646 = vpack.c.b16 %v2366, %v2361
    %v2647 = vpack.c.b16 %v2367, %v2362
    %v2648 = vpack.c.b16 %v2368, %v2363
    %v2649 = vpack.c.b16 %v2374, %v2369
    %v2650 = vpack.c.b16 %v2375, %v2370
    %v2651 = vpack.c.b16 %v2376, %v2371
    %v2652 = vpack.c.b16 %v2377, %v2372
    %v2653 = vpack.c.b16 %v2378, %v2373
    %v2654 = vpack.c.b16 %v2384, %v2379
    %v2655 = vpack.c.b16 %v2385, %v2380
    %v2656 = vpack.c.b16 %v2386, %v2381
    %v2657 = vpack.c.b16 %v2387, %v2382
    %v2658 = vpack.c.b16 %v2388, %v2383
    %v2659 = vpack.c.b16 %v2394, %v2389
    %v2660 = vpack.c.b16 %v2395, %v2390
    %v2661 = vpack.c.b16 %v2396, %v2391
    %v2662 = vpack.c.b16 %v2397, %v2392
    %v2663 = vpack.c.b16 %v2398, %v2393
    %v2664 = vpack.c.b16 %v2404, %v2399
    %v2665 = vpack.c.b16 %v2405, %v2400
    %v2666 = vpack.c.b16 %v2406, %v2401
    %v2667 = vpack.c.b16 %v2407, %v2402
    %v2668 = vpack.c.b16 %v2408, %v2403
    %v2669 = vpack.c.b16 %v2414, %v2409
    %v2670 = vpack.c.b16 %v2415, %v2410
    %v2671 = vpack.c.b16 %v2416, %v2411
    %v2672 = vpack.c.b16 %v2417, %v2412
    %v2673 = vpack.c.b16 %v2418, %v2413
    %v2674 = vpack.c.b16 %v2424, %v2419
    %v2675 = vpack.c.b16 %v2425, %v2420
    %v2676 = vpack.c.b16 %v2426, %v2421
    %v2677 = vpack.c.b16 %v2427, %v2422
    %v2678 = vpack.c.b16 %v2428, %v2423
    %v2679 = vpack.c.b16 %v2434, %v2429
    %v2680 = vpack.c.b16 %v2435, %v2430
    %v2681 = vpack.c.b16 %v2436, %v2431
    %v2682 = vpack.c.b16 %v2437, %v2432
    %v2683 = vpack.c.b16 %v2438, %v2433
    %v2684 = vpack.c.b16 %v2444, %v2439
    %v2685 = vpack.c.b16 %v2445, %v2440
    %v2686 = vpack.c.b16 %v2446, %v2441
    %v2687 = vpack.c.b16 %v2447, %v2442
    %v2688 = vpack.c.b16 %v2448, %v2443
    %v2689 = vpack.c.b16 %v2454, %v2449
    %v2690 = vpack.c.b16 %v2455, %v2450
    %v2691 = vpack.c.b16 %v2456, %v2451
    %v2692 = vpack.c.b16 %v2457, %v2452
    %v2693 = vpack.c.b16 %v2458, %v2453
    %v2694 = vpack.c.b16 %v2464, %v2459
    %v2695 = vpack.c.b16 %v2465, %v2460
    %v2696 = vpack.c.b16 %v2466, %v2461
    %v2697 = vpack.c.b16 %v2467, %v2462
    %v2698 = vpack.c.b16 %v2468, %v2463
    %v2699 = vpack.c.b16 %v2474, %v2469
    %v2700 = vpack.c.b16 %v2475, %v2470
    %v2701 = vpack.c.b16 %v2476, %v2471
    %v2702 = vpack.c.b16 %v2477, %v2472
    %v2703 = vpack.c.b16 %v2478, %v2473
    %v2704 = vpack.c.b16 %v2484, %v2479
    %v2705 = vpack.c.b16 %v2485, %v2480
    %v2706 = vpack.c.b16 %v2486, %v2481
    %v2707 = vpack.c.b16 %v2487, %v2482
    %v2708 = vpack.c.b16 %v2488, %v2483
    %v2709 = vpack.c.b16 %v2494, %v2489
    %v2710 = vpack.c.b16 %v2495, %v2490
    %v2711 = vpack.c.b16 %v2496, %v2491
    %v2712 = vpack.c.b16 %v2497, %v2492
    %v2713 = vpack.c.b16 %v2498, %v2493
    %v2714 = vpack.c.b16 %v2504, %v2499
    %v2715 = vpack.c.b16 %v2505, %v2500
    %v2716 = vpack.c.b16 %v2506, %v2501
    %v2717 = vpack.c.b16 %v2507, %v2502
    %v2718 = vpack.c.b16 %v2508, %v2503
    %v2719 = vpack.c.b16 %v2514, %v2509
    %v2720 = vpack.c.b16 %v2515, %v2510
    %v2721 = vpack.c.b16 %v2516, %v2511
    %v2722 = vpack.c.b16 %v2517, %v2512
    %v2723 = vpack.c.b16 %v2518, %v2513
    %v2724 = vpack.c.b16 %v2524, %v2519
    %v2725 = vpack.c.b16 %v2525, %v2520
    %v2726 = vpack.c.b16 %v2526, %v2521
    %v2727 = vpack.c.b16 %v2527, %v2522
    %v2728 = vpack.c.b16 %v2528, %v2523
    %2929 = vmatpush.bf16.msra.mxu0 %v2564
    %2930 = vmatpush.bf16.msra.mxu0 %v2559
    %2931 = vmatpush.bf16.msra.mxu0 %v2554
    %2932 = vmatpush.bf16.msra.mxu0 %v2549
    %2933 = vmatpush.bf16.msra.mxu0 %v2544
    %2934 = vmatpush.bf16.msra.mxu0 %v2539
    %2935 = vmatpush.bf16.msra.mxu0 %v2534
    %2936 = vmatpush.bf16.msra.mxu0 %v2529
    %2937 = vmatmul.bf16.gmra.mxu0 %v1632
    %v2938 = vpop.f32.mrf.mxu0
    %v2939 = vadd.f32 %v1879, %v2938
    %v2940 = vpop.f32.mrf.mxu0
    %2941 = vdwg.mxu0
    %2942 = vmatpush.bf16.msra.mxu0 %v2604
    %2943 = vmatpush.bf16.msra.mxu0 %v2599
    %2944 = vmatpush.bf16.msra.mxu0 %v2594
    %2945 = vmatpush.bf16.msra.mxu0 %v2589
    %2946 = vmatpush.bf16.msra.mxu0 %v2584
    %2947 = vmatpush.bf16.msra.mxu0 %v2579
    %2948 = vmatpush.bf16.msra.mxu0 %v2574
    %2949 = vmatpush.bf16.msra.mxu0 %v2569
    %2950 = vmatmul.bf16.gmra.mxu0 %v1633
    %v2951 = vpop.f32.mrf.mxu0
    %v2952 = vadd.f32 %v2939, %v2951
    %v2953 = vpop.f32.mrf.mxu0
    %2954 = vdwg.mxu0
    %2955 = vmatpush.bf16.msra.mxu0 %v2644
    %2956 = vmatpush.bf16.msra.mxu0 %v2639
    %2957 = vmatpush.bf16.msra.mxu0 %v2634
    %2958 = vmatpush.bf16.msra.mxu0 %v2629
    %2959 = vmatpush.bf16.msra.mxu0 %v2624
    %2960 = vmatpush.bf16.msra.mxu0 %v2619
    %2961 = vmatpush.bf16.msra.mxu0 %v2614
    %2962 = vmatpush.bf16.msra.mxu0 %v2609
    %2963 = vmatmul.bf16.gmra.mxu0 %v1634
    %v2964 = vpop.f32.mrf.mxu0
    %v2965 = vadd.f32 %v2952, %v2964
    %v2966 = vpop.f32.mrf.mxu0
    %2967 = vdwg.mxu0
    %2968 = vmatpush.bf16.msra.mxu0 %v2684
    %2969 = vmatpush.bf16.msra.mxu0 %v2679
    %2970 = vmatpush.bf16.msra.mxu0 %v2674
    %2971 = vmatpush.bf16.msra.mxu0 %v2669
    %2972 = vmatpush.bf16.msra.mxu0 %v2664
    %2973 = vmatpush.bf16.msra.mxu0 %v2659
    %2974 = vmatpush.bf16.msra.mxu0 %v2654
    %2975 = vmatpush.bf16.msra.mxu0 %v2649
    %2976 = vmatmul.bf16.gmra.mxu0 %v1635
    %v2977 = vpop.f32.mrf.mxu0
    %v2978 = vadd.f32 %v2965, %v2977
    %v2979 = vpop.f32.mrf.mxu0
    %2980 = vdwg.mxu0
    %2981 = vmatpush.bf16.msra.mxu0 %v2724
    %2982 = vmatpush.bf16.msra.mxu0 %v2719
    %2983 = vmatpush.bf16.msra.mxu0 %v2714
    %2984 = vmatpush.bf16.msra.mxu0 %v2709
    %2985 = vmatpush.bf16.msra.mxu0 %v2704
    %2986 = vmatpush.bf16.msra.mxu0 %v2699
    %2987 = vmatpush.bf16.msra.mxu0 %v2694
    %2988 = vmatpush.bf16.msra.mxu0 %v2689
    %2989 = vmatmul.bf16.gmra.mxu0 %v1636
    %v2990 = vpop.f32.mrf.mxu0
    %v2991 = vadd.f32 %v2978, %v2990
    %v2992 = vpop.f32.mrf.mxu0
    %2993 = vdwg.mxu0
    %2994 = vmatpush.bf16.msra.mxu0 %v2565
    %2995 = vmatpush.bf16.msra.mxu0 %v2560
    %2996 = vmatpush.bf16.msra.mxu0 %v2555
    %2997 = vmatpush.bf16.msra.mxu0 %v2550
    %2998 = vmatpush.bf16.msra.mxu0 %v2545
    %2999 = vmatpush.bf16.msra.mxu0 %v2540
    %3000 = vmatpush.bf16.msra.mxu0 %v2535
    %3001 = vmatpush.bf16.msra.mxu0 %v2530
    %3002 = vmatmul.bf16.gmra.mxu0 %v1632
    %v3003 = vpop.f32.mrf.mxu0
    %v3004 = vadd.f32 %v1880, %v3003
    %v3005 = vpop.f32.mrf.mxu0
    %3006 = vdwg.mxu0
    %3007 = vmatpush.bf16.msra.mxu0 %v2605
    %3008 = vmatpush.bf16.msra.mxu0 %v2600
    %3009 = vmatpush.bf16.msra.mxu0 %v2595
    %3010 = vmatpush.bf16.msra.mxu0 %v2590
    %3011 = vmatpush.bf16.msra.mxu0 %v2585
    %3012 = vmatpush.bf16.msra.mxu0 %v2580
    %3013 = vmatpush.bf16.msra.mxu0 %v2575
    %3014 = vmatpush.bf16.msra.mxu0 %v2570
    %3015 = vmatmul.bf16.gmra.mxu0 %v1633
    %v3016 = vpop.f32.mrf.mxu0
    %v3017 = vadd.f32 %v3004, %v3016
    %v3018 = vpop.f32.mrf.mxu0
    %3019 = vdwg.mxu0
    %3020 = vmatpush.bf16.msra.mxu0 %v2645
    %3021 = vmatpush.bf16.msra.mxu0 %v2640
    %3022 = vmatpush.bf16.msra.mxu0 %v2635
    %3023 = vmatpush.bf16.msra.mxu0 %v2630
    %3024 = vmatpush.bf16.msra.mxu0 %v2625
    %3025 = vmatpush.bf16.msra.mxu0 %v2620
    %3026 = vmatpush.bf16.msra.mxu0 %v2615
    %3027 = vmatpush.bf16.msra.mxu0 %v2610
    %3028 = vmatmul.bf16.gmra.mxu0 %v1634
    %v3029 = vpop.f32.mrf.mxu0
    %v3030 = vadd.f32 %v3017, %v3029
    %v3031 = vpop.f32.mrf.mxu0
    %3032 = vdwg.mxu0
    %3033 = vmatpush.bf16.msra.mxu0 %v2685
    %3034 = vmatpush.bf16.msra.mxu0 %v2680
    %3035 = vmatpush.bf16.msra.mxu0 %v2675
    %3036 = vmatpush.bf16.msra.mxu0 %v2670
    %3037 = vmatpush.bf16.msra.mxu0 %v2665
    %3038 = vmatpush.bf16.msra.mxu0 %v2660
    %3039 = vmatpush.bf16.msra.mxu0 %v2655
    %3040 = vmatpush.bf16.msra.mxu0 %v2650
    %3041 = vmatmul.bf16.gmra.mxu0 %v1635
    %v3042 = vpop.f32.mrf.mxu0
    %v3043 = vadd.f32 %v3030, %v3042
    %v3044 = vpop.f32.mrf.mxu0
    %3045 = vdwg.mxu0
    %3046 = vmatpush.bf16.msra.mxu0 %v2725
    %3047 = vmatpush.bf16.msra.mxu0 %v2720
    %3048 = vmatpush.bf16.msra.mxu0 %v2715
    %3049 = vmatpush.bf16.msra.mxu0 %v2710
    %3050 = vmatpush.bf16.msra.mxu0 %v2705
    %3051 = vmatpush.bf16.msra.mxu0 %v2700
    %3052 = vmatpush.bf16.msra.mxu0 %v2695
    %3053 = vmatpush.bf16.msra.mxu0 %v2690
    %3054 = vmatmul.bf16.gmra.mxu0 %v1636
    %v3055 = vpop.f32.mrf.mxu0
    %v3056 = vadd.f32 %v3043, %v3055
    %v3057 = vpop.f32.mrf.mxu0
    %3058 = vdwg.mxu0
    %3059 = vmatpush.bf16.msra.mxu0 %v2566
    %3060 = vmatpush.bf16.msra.mxu0 %v2561
    %3061 = vmatpush.bf16.msra.mxu0 %v2556
    %3062 = vmatpush.bf16.msra.mxu0 %v2551
    %3063 = vmatpush.bf16.msra.mxu0 %v2546
    %3064 = vmatpush.bf16.msra.mxu0 %v2541
    %3065 = vmatpush.bf16.msra.mxu0 %v2536
    %3066 = vmatpush.bf16.msra.mxu0 %v2531
    %3067 = vmatmul.bf16.gmra.mxu0 %v1632
    %v3068 = vpop.f32.mrf.mxu0
    %v3069 = vadd.f32 %v1881, %v3068
    %v3070 = vpop.f32.mrf.mxu0
    %3071 = vdwg.mxu0
    %3072 = vmatpush.bf16.msra.mxu0 %v2606
    %3073 = vmatpush.bf16.msra.mxu0 %v2601
    %3074 = vmatpush.bf16.msra.mxu0 %v2596
    %3075 = vmatpush.bf16.msra.mxu0 %v2591
    %3076 = vmatpush.bf16.msra.mxu0 %v2586
    %3077 = vmatpush.bf16.msra.mxu0 %v2581
    %3078 = vmatpush.bf16.msra.mxu0 %v2576
    %3079 = vmatpush.bf16.msra.mxu0 %v2571
    %3080 = vmatmul.bf16.gmra.mxu0 %v1633
    %v3081 = vpop.f32.mrf.mxu0
    %v3082 = vadd.f32 %v3069, %v3081
    %v3083 = vpop.f32.mrf.mxu0
    %3084 = vdwg.mxu0
    %3085 = vmatpush.bf16.msra.mxu0 %v2646
    %3086 = vmatpush.bf16.msra.mxu0 %v2641
    %3087 = vmatpush.bf16.msra.mxu0 %v2636
    %3088 = vmatpush.bf16.msra.mxu0 %v2631
    %3089 = vmatpush.bf16.msra.mxu0 %v2626
    %3090 = vmatpush.bf16.msra.mxu0 %v2621
    %3091 = vmatpush.bf16.msra.mxu0 %v2616
    %3092 = vmatpush.bf16.msra.mxu0 %v2611
    %3093 = vmatmul.bf16.gmra.mxu0 %v1634
    %v3094 = vpop.f32.mrf.mxu0
    %v3095 = vadd.f32 %v3082, %v3094
    %v3096 = vpop.f32.mrf.mxu0
    %3097 = vdwg.mxu0
    %3098 = vmatpush.bf16.msra.mxu0 %v2686
    %3099 = vmatpush.bf16.msra.mxu0 %v2681
    %3100 = vmatpush.bf16.msra.mxu0 %v2676
    %3101 = vmatpush.bf16.msra.mxu0 %v2671
    %3102 = vmatpush.bf16.msra.mxu0 %v2666
    %3103 = vmatpush.bf16.msra.mxu0 %v2661
    %3104 = vmatpush.bf16.msra.mxu0 %v2656
    %3105 = vmatpush.bf16.msra.mxu0 %v2651
    %3106 = vmatmul.bf16.gmra.mxu0 %v1635
    %v3107 = vpop.f32.mrf.mxu0
    %v3108 = vadd.f32 %v3095, %v3107
    %v3109 = vpop.f32.mrf.mxu0
    %3110 = vdwg.mxu0
    %3111 = vmatpush.bf16.msra.mxu0 %v2726
    %3112 = vmatpush.bf16.msra.mxu0 %v2721
    %3113 = vmatpush.bf16.msra.mxu0 %v2716
    %3114 = vmatpush.bf16.msra.mxu0 %v2711
    %3115 = vmatpush.bf16.msra.mxu0 %v2706
    %3116 = vmatpush.bf16.msra.mxu0 %v2701
    %3117 = vmatpush.bf16.msra.mxu0 %v2696
    %3118 = vmatpush.bf16.msra.mxu0 %v2691
    %3119 = vmatmul.bf16.gmra.mxu0 %v1636
    %v3120 = vpop.f32.mrf.mxu0
    %v3121 = vadd.f32 %v3108, %v3120
    %v3122 = vpop.f32.mrf.mxu0
    %3123 = vdwg.mxu0
    %3124 = vmatpush.bf16.msra.mxu0 %v2567
    %3125 = vmatpush.bf16.msra.mxu0 %v2562
    %3126 = vmatpush.bf16.msra.mxu0 %v2557
    %3127 = vmatpush.bf16.msra.mxu0 %v2552
    %3128 = vmatpush.bf16.msra.mxu0 %v2547
    %3129 = vmatpush.bf16.msra.mxu0 %v2542
    %3130 = vmatpush.bf16.msra.mxu0 %v2537
    %3131 = vmatpush.bf16.msra.mxu0 %v2532
    %3132 = vmatmul.bf16.gmra.mxu0 %v1632
    %v3133 = vpop.f32.mrf.mxu0
    %v3134 = vadd.f32 %v1882, %v3133
    %v3135 = vpop.f32.mrf.mxu0
    %3136 = vdwg.mxu0
    %3137 = vmatpush.bf16.msra.mxu0 %v2607
    %3138 = vmatpush.bf16.msra.mxu0 %v2602
    %3139 = vmatpush.bf16.msra.mxu0 %v2597
    %3140 = vmatpush.bf16.msra.mxu0 %v2592
    %3141 = vmatpush.bf16.msra.mxu0 %v2587
    %3142 = vmatpush.bf16.msra.mxu0 %v2582
    %3143 = vmatpush.bf16.msra.mxu0 %v2577
    %3144 = vmatpush.bf16.msra.mxu0 %v2572
    %3145 = vmatmul.bf16.gmra.mxu0 %v1633
    %v3146 = vpop.f32.mrf.mxu0
    %v3147 = vadd.f32 %v3134, %v3146
    %v3148 = vpop.f32.mrf.mxu0
    %3149 = vdwg.mxu0
    %3150 = vmatpush.bf16.msra.mxu0 %v2647
    %3151 = vmatpush.bf16.msra.mxu0 %v2642
    %3152 = vmatpush.bf16.msra.mxu0 %v2637
    %3153 = vmatpush.bf16.msra.mxu0 %v2632
    %3154 = vmatpush.bf16.msra.mxu0 %v2627
    %3155 = vmatpush.bf16.msra.mxu0 %v2622
    %3156 = vmatpush.bf16.msra.mxu0 %v2617
    %3157 = vmatpush.bf16.msra.mxu0 %v2612
    %3158 = vmatmul.bf16.gmra.mxu0 %v1634
    %v3159 = vpop.f32.mrf.mxu0
    %v3160 = vadd.f32 %v3147, %v3159
    %v3161 = vpop.f32.mrf.mxu0
    %3162 = vdwg.mxu0
    %3163 = vmatpush.bf16.msra.mxu0 %v2687
    %3164 = vmatpush.bf16.msra.mxu0 %v2682
    %3165 = vmatpush.bf16.msra.mxu0 %v2677
    %3166 = vmatpush.bf16.msra.mxu0 %v2672
    %3167 = vmatpush.bf16.msra.mxu0 %v2667
    %3168 = vmatpush.bf16.msra.mxu0 %v2662
    %3169 = vmatpush.bf16.msra.mxu0 %v2657
    %3170 = vmatpush.bf16.msra.mxu0 %v2652
    %3171 = vmatmul.bf16.gmra.mxu0 %v1635
    %v3172 = vpop.f32.mrf.mxu0
    %v3173 = vadd.f32 %v3160, %v3172
    %v3174 = vpop.f32.mrf.mxu0
    %3175 = vdwg.mxu0
    %3176 = vmatpush.bf16.msra.mxu0 %v2727
    %3177 = vmatpush.bf16.msra.mxu0 %v2722
    %3178 = vmatpush.bf16.msra.mxu0 %v2717
    %3179 = vmatpush.bf16.msra.mxu0 %v2712
    %3180 = vmatpush.bf16.msra.mxu0 %v2707
    %3181 = vmatpush.bf16.msra.mxu0 %v2702
    %3182 = vmatpush.bf16.msra.mxu0 %v2697
    %3183 = vmatpush.bf16.msra.mxu0 %v2692
    %3184 = vmatmul.bf16.gmra.mxu0 %v1636
    %v3185 = vpop.f32.mrf.mxu0
    %v3186 = vadd.f32 %v3173, %v3185
    %v3187 = vpop.f32.mrf.mxu0
    %3188 = vdwg.mxu0
    %3189 = vmatpush.bf16.msra.mxu0 %v2568
    %3190 = vmatpush.bf16.msra.mxu0 %v2563
    %3191 = vmatpush.bf16.msra.mxu0 %v2558
    %3192 = vmatpush.bf16.msra.mxu0 %v2553
    %3193 = vmatpush.bf16.msra.mxu0 %v2548
    %3194 = vmatpush.bf16.msra.mxu0 %v2543
    %3195 = vmatpush.bf16.msra.mxu0 %v2538
    %3196 = vmatpush.bf16.msra.mxu0 %v2533
    %3197 = vmatmul.bf16.gmra.mxu0 %v1632
    %v3198 = vpop.f32.mrf.mxu0
    %v3199 = vadd.f32 %v1883, %v3198
    %v3200 = vpop.f32.mrf.mxu0
    %3201 = vdwg.mxu0
    %3202 = vmatpush.bf16.msra.mxu0 %v2608
    %3203 = vmatpush.bf16.msra.mxu0 %v2603
    %3204 = vmatpush.bf16.msra.mxu0 %v2598
    %3205 = vmatpush.bf16.msra.mxu0 %v2593
    %3206 = vmatpush.bf16.msra.mxu0 %v2588
    %3207 = vmatpush.bf16.msra.mxu0 %v2583
    %3208 = vmatpush.bf16.msra.mxu0 %v2578
    %3209 = vmatpush.bf16.msra.mxu0 %v2573
    %3210 = vmatmul.bf16.gmra.mxu0 %v1633
    %v3211 = vpop.f32.mrf.mxu0
    %v3212 = vadd.f32 %v3199, %v3211
    %v3213 = vpop.f32.mrf.mxu0
    %3214 = vdwg.mxu0
    %3215 = vmatpush.bf16.msra.mxu0 %v2648
    %3216 = vmatpush.bf16.msra.mxu0 %v2643
    %3217 = vmatpush.bf16.msra.mxu0 %v2638
    %3218 = vmatpush.bf16.msra.mxu0 %v2633
    %3219 = vmatpush.bf16.msra.mxu0 %v2628
    %3220 = vmatpush.bf16.msra.mxu0 %v2623
    %3221 = vmatpush.bf16.msra.mxu0 %v2618
    %3222 = vmatpush.bf16.msra.mxu0 %v2613
    %3223 = vmatmul.bf16.gmra.mxu0 %v1634
    %v3224 = vpop.f32.mrf.mxu0
    %v3225 = vadd.f32 %v3212, %v3224
    %v3226 = vpop.f32.mrf.mxu0
    %3227 = vdwg.mxu0
    %3228 = vmatpush.bf16.msra.mxu0 %v2688
    %3229 = vmatpush.bf16.msra.mxu0 %v2683
    %3230 = vmatpush.bf16.msra.mxu0 %v2678
    %3231 = vmatpush.bf16.msra.mxu0 %v2673
    %3232 = vmatpush.bf16.msra.mxu0 %v2668
    %3233 = vmatpush.bf16.msra.mxu0 %v2663
    %3234 = vmatpush.bf16.msra.mxu0 %v2658
    %3235 = vmatpush.bf16.msra.mxu0 %v2653
    %3236 = vmatmul.bf16.gmra.mxu0 %v1635
    %v3237 = vpop.f32.mrf.mxu0
    %v3238 = vadd.f32 %v3225, %v3237
    %v3239 = vpop.f32.mrf.mxu0
    %3240 = vdwg.mxu0
    %3241 = vmatpush.bf16.msra.mxu0 %v2728
    %3242 = vmatpush.bf16.msra.mxu0 %v2723
    %3243 = vmatpush.bf16.msra.mxu0 %v2718
    %3244 = vmatpush.bf16.msra.mxu0 %v2713
    %3245 = vmatpush.bf16.msra.mxu0 %v2708
    %3246 = vmatpush.bf16.msra.mxu0 %v2703
    %3247 = vmatpush.bf16.msra.mxu0 %v2698
    %3248 = vmatpush.bf16.msra.mxu0 %v2693
    %3249 = vmatmul.bf16.gmra.mxu0 %v1636
    %v3250 = vpop.f32.mrf.mxu0
    %v3251 = vadd.f32 %v3238, %v3250
    %v3252 = vpop.f32.mrf.mxu0
    %3253 = vdwg.mxu0
    %v3254 = vmax.f32 %v2991, 0.0
    %v3255 = vmax.f32 %v3056, 0.0
    %v3256 = vmax.f32 %v3121, 0.0
    %v3257 = vmax.f32 %v3186, 0.0
    %v3258 = vmax.f32 %v3251, 0.0
    %v3259 = vpack.c.bf16 %v3254, %v3254
    %v3260 = vpack.c.bf16 %v3255, %v3255
    %v3261 = vpack.c.bf16 %v3256, %v3256
    %v3262 = vpack.c.bf16 %v3257, %v3257
    %v3263 = vpack.c.bf16 %v3258, %v3258
    %v3264 = vld [vmem:[#allocation9] sm:$0xf]
    %v3265 = vld [vmem:[#allocation9 + $0x4] sm:$0xf]
    %v3266 = vld [vmem:[#allocation9 + $0x8] sm:$0xf]
    %v3267 = vld [vmem:[#allocation9 + $0xc] sm:$0xf]
    %v3268 = vld [vmem:[#allocation9 + $0x10] sm:$0xf]
    %v3269 = vld [vmem:[#allocation9 + $0x14] sm:$0xf]
    %v3270 = vld [vmem:[#allocation9 + $0x18] sm:$0xf]
    %v3271 = vld [vmem:[#allocation9 + $0x1c] sm:$0xf]
    %v3272 = vld [vmem:[#allocation9 + $0x20] sm:$0xf]
    %v3273 = vld [vmem:[#allocation9 + $0x24] sm:$0xf]
    %v3274 = vld [vmem:[#allocation9 + $0x28] sm:$0xf]
    %v3275 = vld [vmem:[#allocation9 + $0x2c] sm:$0xf]
    %v3276 = vld [vmem:[#allocation9 + $0x30] sm:$0xf]
    %v3277 = vld [vmem:[#allocation9 + $0x34] sm:$0xf]
    %v3278 = vld [vmem:[#allocation9 + $0x38] sm:$0xf]
    %v3279 = vld [vmem:[#allocation9 + $0x3c] sm:$0xf]
    %v3280 = vld [vmem:[#allocation9 + $0x40] sm:$0xf]
    %v3281 = vld [vmem:[#allocation9 + $0x44] sm:$0xf]
    %v3282 = vld [vmem:[#allocation9 + $0x48] sm:$0xf]
    %v3283 = vld [vmem:[#allocation9 + $0x4c] sm:$0xf]
    %v3284 = vld [vmem:[#allocation9 + $0x50] sm:$0xf]
    %v3285 = vld [vmem:[#allocation9 + $0x54] sm:$0xf]
    %v3286 = vld [vmem:[#allocation9 + $0x58] sm:$0xf]
    %v3287 = vld [vmem:[#allocation9 + $0x5c] sm:$0xf]
    %v3288 = vld [vmem:[#allocation9 + $0x60] sm:$0xf]
    %v3289 = vld [vmem:[#allocation9 + $0x64] sm:$0xf]
    %v3290 = vld [vmem:[#allocation9 + $0x68] sm:$0xf]
    %v3291 = vld [vmem:[#allocation9 + $0x6c] sm:$0xf]
    %v3292 = vld [vmem:[#allocation9 + $0x70] sm:$0xf]
    %v3293 = vld [vmem:[#allocation9 + $0x74] sm:$0xf]
    %v3294 = vld [vmem:[#allocation9 + $0x78] sm:$0xf]
    %v3295 = vld [vmem:[#allocation9 + $0x7c] sm:$0xf]
    %v3296 = vld [vmem:[#allocation9 + $0x80] sm:$0xf]
    %v3297 = vld [vmem:[#allocation9 + $0x84] sm:$0xf]
    %v3298 = vld [vmem:[#allocation9 + $0x88] sm:$0xf]
    %v3299 = vld [vmem:[#allocation9 + $0x8c] sm:$0xf]
    %v3300 = vld [vmem:[#allocation9 + $0x90] sm:$0xf]
    %v3301 = vld [vmem:[#allocation9 + $0x94] sm:$0xf]
    %v3302 = vld [vmem:[#allocation9 + $0x98] sm:$0xf]
    %v3303 = vld [vmem:[#allocation9 + $0x9c] sm:$0xf]
    %v3304 = vld [vmem:[#allocation9 + $0xa0] sm:$0xf]
    %v3305 = vld [vmem:[#allocation9 + $0xa4] sm:$0xf]
    %v3306 = vld [vmem:[#allocation9 + $0xa8] sm:$0xf]
    %v3307 = vld [vmem:[#allocation9 + $0xac] sm:$0xf]
    %v3308 = vld [vmem:[#allocation9 + $0xb0] sm:$0xf]
    %v3309 = vld [vmem:[#allocation9 + $0xb4] sm:$0xf]
    %v3310 = vld [vmem:[#allocation9 + $0xb8] sm:$0xf]
    %v3311 = vld [vmem:[#allocation9 + $0xbc] sm:$0xf]
    %v3312 = vld [vmem:[#allocation9 + $0xc0] sm:$0xf]
    %v3313 = vld [vmem:[#allocation9 + $0xc4] sm:$0xf]
    %v3314 = vld [vmem:[#allocation9 + $0xc8] sm:$0xf]
    %v3315 = vld [vmem:[#allocation9 + $0xcc] sm:$0xf]
    %v3316 = vld [vmem:[#allocation9 + $0xd0] sm:$0xf]
    %v3317 = vld [vmem:[#allocation9 + $0xd4] sm:$0xf]
    %v3318 = vld [vmem:[#allocation9 + $0xd8] sm:$0xf]
    %v3319 = vld [vmem:[#allocation9 + $0xdc] sm:$0xf]
    %v3320 = vld [vmem:[#allocation9 + $0xe0] sm:$0xf]
    %v3321 = vld [vmem:[#allocation9 + $0xe4] sm:$0xf]
    %v3322 = vld [vmem:[#allocation9 + $0xe8] sm:$0xf]
    %v3323 = vld [vmem:[#allocation9 + $0xec] sm:$0xf]
    %v3324 = vld [vmem:[#allocation9 + $0xf0] sm:$0xf]
    %v3325 = vld [vmem:[#allocation9 + $0xf4] sm:$0xf]
    %v3326 = vld [vmem:[#allocation9 + $0xf8] sm:$0xf]
    %v3327 = vld [vmem:[#allocation9 + $0xfc] sm:$0xf]
    %v3328 = vld [vmem:[#allocation9 + $0x100] sm:$0xf]
    %v3329 = vld [vmem:[#allocation9 + $0x104] sm:$0xf]
    %v3330 = vld [vmem:[#allocation9 + $0x108] sm:$0xf]
    %v3331 = vld [vmem:[#allocation9 + $0x10c] sm:$0xf]
    %v3332 = vld [vmem:[#allocation9 + $0x110] sm:$0xf]
    %v3333 = vld [vmem:[#allocation9 + $0x114] sm:$0xf]
    %v3334 = vld [vmem:[#allocation9 + $0x118] sm:$0xf]
    %v3335 = vld [vmem:[#allocation9 + $0x11c] sm:$0xf]
    %v3336 = vld [vmem:[#allocation9 + $0x120] sm:$0xf]
    %v3337 = vld [vmem:[#allocation9 + $0x124] sm:$0xf]
    %v3338 = vld [vmem:[#allocation9 + $0x128] sm:$0xf]
    %v3339 = vld [vmem:[#allocation9 + $0x12c] sm:$0xf]
    %v3340 = vld [vmem:[#allocation9 + $0x130] sm:$0xf]
    %v3341 = vld [vmem:[#allocation9 + $0x134] sm:$0xf]
    %v3342 = vld [vmem:[#allocation9 + $0x138] sm:$0xf]
    %v3343 = vld [vmem:[#allocation9 + $0x13c] sm:$0xf]
    %v3344 = vld [vmem:[%s10] sm:$0x1]
    %v3346 = vperm.slane %v3344, 0
    %v3428 = vunpack.c.l.b16 %v3264
    %v3429 = vunpack.c.l.b16 %v3265
    %v3430 = vunpack.c.l.b16 %v3266
    %v3431 = vunpack.c.l.b16 %v3267
    %v3432 = vunpack.c.l.b16 %v3268
    %v3433 = vunpack.c.l.b16 %v3269
    %v3434 = vunpack.c.l.b16 %v3270
    %v3435 = vunpack.c.l.b16 %v3271
    %v3436 = vunpack.c.l.b16 %v3272
    %v3437 = vunpack.c.l.b16 %v3273
    %v3438 = vunpack.c.l.b16 %v3274
    %v3439 = vunpack.c.l.b16 %v3275
    %v3440 = vunpack.c.l.b16 %v3276
    %v3441 = vunpack.c.l.b16 %v3277
    %v3442 = vunpack.c.l.b16 %v3278
    %v3443 = vunpack.c.l.b16 %v3279
    %v3444 = vunpack.c.l.b16 %v3280
    %v3445 = vunpack.c.l.b16 %v3281
    %v3446 = vunpack.c.l.b16 %v3282
    %v3447 = vunpack.c.l.b16 %v3283
    %v3448 = vunpack.c.l.b16 %v3284
    %v3449 = vunpack.c.l.b16 %v3285
    %v3450 = vunpack.c.l.b16 %v3286
    %v3451 = vunpack.c.l.b16 %v3287
    %v3452 = vunpack.c.l.b16 %v3288
    %v3453 = vunpack.c.l.b16 %v3289
    %v3454 = vunpack.c.l.b16 %v3290
    %v3455 = vunpack.c.l.b16 %v3291
    %v3456 = vunpack.c.l.b16 %v3292
    %v3457 = vunpack.c.l.b16 %v3293
    %v3458 = vunpack.c.l.b16 %v3294
    %v3459 = vunpack.c.l.b16 %v3295
    %v3460 = vunpack.c.l.b16 %v3296
    %v3461 = vunpack.c.l.b16 %v3297
    %v3462 = vunpack.c.l.b16 %v3298
    %v3463 = vunpack.c.l.b16 %v3299
    %v3464 = vunpack.c.l.b16 %v3300
    %v3465 = vunpack.c.l.b16 %v3301
    %v3466 = vunpack.c.l.b16 %v3302
    %v3467 = vunpack.c.l.b16 %v3303
    %v3468 = vunpack.c.l.b16 %v3304
    %v3469 = vunpack.c.l.b16 %v3305
    %v3470 = vunpack.c.l.b16 %v3306
    %v3471 = vunpack.c.l.b16 %v3307
    %v3472 = vunpack.c.l.b16 %v3308
    %v3473 = vunpack.c.l.b16 %v3309
    %v3474 = vunpack.c.l.b16 %v3310
    %v3475 = vunpack.c.l.b16 %v3311
    %v3476 = vunpack.c.l.b16 %v3312
    %v3477 = vunpack.c.l.b16 %v3313
    %v3478 = vunpack.c.l.b16 %v3314
    %v3479 = vunpack.c.l.b16 %v3315
    %v3480 = vunpack.c.l.b16 %v3316
    %v3481 = vunpack.c.l.b16 %v3317
    %v3482 = vunpack.c.l.b16 %v3318
    %v3483 = vunpack.c.l.b16 %v3319
    %v3484 = vunpack.c.l.b16 %v3320
    %v3485 = vunpack.c.l.b16 %v3321
    %v3486 = vunpack.c.l.b16 %v3322
    %v3487 = vunpack.c.l.b16 %v3323
    %v3488 = vunpack.c.l.b16 %v3324
    %v3489 = vunpack.c.l.b16 %v3325
    %v3490 = vunpack.c.l.b16 %v3326
    %v3491 = vunpack.c.l.b16 %v3327
    %v3492 = vunpack.c.l.b16 %v3328
    %v3493 = vunpack.c.l.b16 %v3329
    %v3494 = vunpack.c.l.b16 %v3330
    %v3495 = vunpack.c.l.b16 %v3331
    %v3496 = vunpack.c.l.b16 %v3332
    %v3497 = vunpack.c.l.b16 %v3333
    %v3498 = vunpack.c.l.b16 %v3334
    %v3499 = vunpack.c.l.b16 %v3335
    %v3500 = vunpack.c.l.b16 %v3336
    %v3501 = vunpack.c.l.b16 %v3337
    %v3502 = vunpack.c.l.b16 %v3338
    %v3503 = vunpack.c.l.b16 %v3339
    %v3504 = vunpack.c.l.b16 %v3340
    %v3505 = vunpack.c.l.b16 %v3341
    %v3506 = vunpack.c.l.b16 %v3342
    %v3507 = vunpack.c.l.b16 %v3343
    %v3508 = vpack.c.b16 %v3429, %v3428
    %v3509 = vpack.c.b16 %v3431, %v3430
    %v3510 = vpack.c.b16 %v3433, %v3432
    %v3511 = vpack.c.b16 %v3435, %v3434
    %v3512 = vpack.c.b16 %v3437, %v3436
    %v3513 = vpack.c.b16 %v3439, %v3438
    %v3514 = vpack.c.b16 %v3441, %v3440
    %v3515 = vpack.c.b16 %v3443, %v3442
    %v3516 = vpack.c.b16 %v3445, %v3444
    %v3517 = vpack.c.b16 %v3447, %v3446
    %v3518 = vpack.c.b16 %v3449, %v3448
    %v3519 = vpack.c.b16 %v3451, %v3450
    %v3520 = vpack.c.b16 %v3453, %v3452
    %v3521 = vpack.c.b16 %v3455, %v3454
    %v3522 = vpack.c.b16 %v3457, %v3456
    %v3523 = vpack.c.b16 %v3459, %v3458
    %v3524 = vpack.c.b16 %v3461, %v3460
    %v3525 = vpack.c.b16 %v3463, %v3462
    %v3526 = vpack.c.b16 %v3465, %v3464
    %v3527 = vpack.c.b16 %v3467, %v3466
    %v3528 = vpack.c.b16 %v3469, %v3468
    %v3529 = vpack.c.b16 %v3471, %v3470
    %v3530 = vpack.c.b16 %v3473, %v3472
    %v3531 = vpack.c.b16 %v3475, %v3474
    %v3532 = vpack.c.b16 %v3477, %v3476
    %v3533 = vpack.c.b16 %v3479, %v3478
    %v3534 = vpack.c.b16 %v3481, %v3480
    %v3535 = vpack.c.b16 %v3483, %v3482
    %v3536 = vpack.c.b16 %v3485, %v3484
    %v3537 = vpack.c.b16 %v3487, %v3486
    %v3538 = vpack.c.b16 %v3489, %v3488
    %v3539 = vpack.c.b16 %v3491, %v3490
    %v3540 = vpack.c.b16 %v3493, %v3492
    %v3541 = vpack.c.b16 %v3495, %v3494
    %v3542 = vpack.c.b16 %v3497, %v3496
    %v3543 = vpack.c.b16 %v3499, %v3498
    %v3544 = vpack.c.b16 %v3501, %v3500
    %v3545 = vpack.c.b16 %v3503, %v3502
    %v3546 = vpack.c.b16 %v3505, %v3504
    %v3547 = vpack.c.b16 %v3507, %v3506
    %3588 = vmatpush.bf16.msra.mxu0 %v3515
    %3589 = vmatpush.bf16.msra.mxu0 %v3514
    %3590 = vmatpush.bf16.msra.mxu0 %v3513
    %3591 = vmatpush.bf16.msra.mxu0 %v3512
    %3592 = vmatpush.bf16.msra.mxu0 %v3511
    %3593 = vmatpush.bf16.msra.mxu0 %v3510
    %3594 = vmatpush.bf16.msra.mxu0 %v3509
    %3595 = vmatpush.bf16.msra.mxu0 %v3508
    %3596 = vmatmul.bf16.gmra.mxu0 %v3259
    %v3597 = vpop.f32.mrf.mxu0
    %v3598 = vadd.f32 %v3346, %v3597
    %v3599 = vpop.f32.mrf.mxu0
    %3600 = vdwg.mxu0
    %3601 = vmatpush.bf16.msra.mxu0 %v3523
    %3602 = vmatpush.bf16.msra.mxu0 %v3522
    %3603 = vmatpush.bf16.msra.mxu0 %v3521
    %3604 = vmatpush.bf16.msra.mxu0 %v3520
    %3605 = vmatpush.bf16.msra.mxu0 %v3519
    %3606 = vmatpush.bf16.msra.mxu0 %v3518
    %3607 = vmatpush.bf16.msra.mxu0 %v3517
    %3608 = vmatpush.bf16.msra.mxu0 %v3516
    %3609 = vmatmul.bf16.gmra.mxu0 %v3260
    %v3610 = vpop.f32.mrf.mxu0
    %v3611 = vadd.f32 %v3598, %v3610
    %v3612 = vpop.f32.mrf.mxu0
    %3613 = vdwg.mxu0
    %3614 = vmatpush.bf16.msra.mxu0 %v3531
    %3615 = vmatpush.bf16.msra.mxu0 %v3530
    %3616 = vmatpush.bf16.msra.mxu0 %v3529
    %3617 = vmatpush.bf16.msra.mxu0 %v3528
    %3618 = vmatpush.bf16.msra.mxu0 %v3527
    %3619 = vmatpush.bf16.msra.mxu0 %v3526
    %3620 = vmatpush.bf16.msra.mxu0 %v3525
    %3621 = vmatpush.bf16.msra.mxu0 %v3524
    %3622 = vmatmul.bf16.gmra.mxu0 %v3261
    %v3623 = vpop.f32.mrf.mxu0
    %v3624 = vadd.f32 %v3611, %v3623
    %v3625 = vpop.f32.mrf.mxu0
    %3626 = vdwg.mxu0
    %3627 = vmatpush.bf16.msra.mxu0 %v3539
    %3628 = vmatpush.bf16.msra.mxu0 %v3538
    %3629 = vmatpush.bf16.msra.mxu0 %v3537
    %3630 = vmatpush.bf16.msra.mxu0 %v3536
    %3631 = vmatpush.bf16.msra.mxu0 %v3535
    %3632 = vmatpush.bf16.msra.mxu0 %v3534
    %3633 = vmatpush.bf16.msra.mxu0 %v3533
    %3634 = vmatpush.bf16.msra.mxu0 %v3532
    %3635 = vmatmul.bf16.gmra.mxu0 %v3262
    %v3636 = vpop.f32.mrf.mxu0
    %v3637 = vadd.f32 %v3624, %v3636
    %v3638 = vpop.f32.mrf.mxu0
    %3639 = vdwg.mxu0
    %3640 = vmatpush.bf16.msra.mxu0 %v3547
    %3641 = vmatpush.bf16.msra.mxu0 %v3546
    %3642 = vmatpush.bf16.msra.mxu0 %v3545
    %3643 = vmatpush.bf16.msra.mxu0 %v3544
    %3644 = vmatpush.bf16.msra.mxu0 %v3543
    %3645 = vmatpush.bf16.msra.mxu0 %v3542
    %3646 = vmatpush.bf16.msra.mxu0 %v3541
    %3647 = vmatpush.bf16.msra.mxu0 %v3540
    %3648 = vmatmul.bf16.gmra.mxu0 %v3263
    %v3649 = vpop.f32.mrf.mxu0
    %v3650 = vadd.f32 %v3637, %v3649
    %v3651 = vpop.f32.mrf.mxu0
    %3652 = vdwg.mxu0
    %3653 = vst [vmem:[%s11] sm:$0xff] %v3650
    // Predicated region
    $region66: #{critic_forward.1} parent=1 // pred_check
      _
    $region67: #{critic_forward.1} parent=1 // pred_check_branch
      %3655 = sbr.rel (0) target = $region69
    $region68: #{critic_forward.1} parent=1 // pred_region
      _
    $region69: #{critic_forward.1} parent=1 // pred_fallthru
      _
    // Predicated region
    $region70: #{critic_forward.1} parent=1 // pred_check
      _
    $region71: #{critic_forward.1} parent=1 // pred_check_branch
      %3657 = sbr.rel (0) target = $region73
    $region72: #{critic_forward.1} parent=1 // pred_region
      _
    $region73: #{critic_forward.1} parent=1 // pred_fallthru
      _
    %3658 = vsyncpa [#allocation3], 1
    %3659 = vsyncpa [#allocation5], 1
    %3660 = vsyncpa [#allocation8], 1

</llo_original>
